<compile_context>
chip_gen: v5e
topology: v5e:2x2
jax: 0.10.0
libtpu: 0.0.40
codegen_flags: <defaults>
</compile_context>

<pallas_src>
import functools

import jax
import jax.numpy as jnp
from jax.experimental import pallas as pl
from jax.experimental.pallas import tpu as pltpu


# ---------------------------------------------------------------------------
# Fused Pallas kernel: all GIN layers + VN updates + final add-pool
# ---------------------------------------------------------------------------

def gnn_fused_kernel(x0_ref, vn0_ref, src_ref, dstT_ref, bnode_ref, bT_ref,
                     eps_ref, ee_ref, wH_ref, wD_ref, vecH_ref, vecD_ref,
                     out_ref, h_s, vn_s):
    """One grid step == one GNN layer.

    x0     [Np, D]   atom-encoder node features (f32, padded)
    vn0    [Gp, D]   initial virtual-node embedding (f32)
    src    [Ep, Np]  one-hot(edge -> source node), bf16   (gather x_j)
    dstT   [Np, Ep]  one-hot(node <- edge target), bf16   (scatter-add)
    bnode  [Np, Gp]  one-hot(node -> graph), bf16         (gather vn)
    bT     [Gp, Np]  one-hot(graph <- node), bf16         (add-pool)
    eps    [L]       per-layer GIN eps, SMEM
    ee     [Ep, D]   bond-encoder edge embeddings for this layer (bf16)
    wH     [2, D, H] (w1, vn_w1) bf16      wD [2, H, D] (w2, vn_w2) bf16
    vecH   [8, H]    rows: s1, t1', vs1, vt1' (folded bias+BN scale/shift)
    vecD   [8, D]    rows: s2, t2', vs2, vt2'
    h_s    [Np, D]   node-feature state (VMEM scratch, f32)
    vn_s   [Gp, D]   virtual-node state (VMEM scratch, f32)
    """
    l = pl.program_id(0)
    last = pl.num_programs(0) - 1

    @pl.when(l == 0)
    def _init():
        h_s[...] = x0_ref[...]
        vn_s[...] = vn0_ref[...]

    # h_list[layer] = h_list[layer] + virtualnode_embedding[batch]
    x_in = h_s[...] + jnp.dot(bnode_ref[...], vn_s[...].astype(jnp.bfloat16),
                              preferred_element_type=jnp.float32)      # [Np, D] f32
    x_in_b = x_in.astype(jnp.bfloat16)

    # GIN message passing: msg = relu(x_j + edge_attr) (bf16), 'add' aggregation.
    x_j = jnp.dot(src_ref[...], x_in_b,
                  preferred_element_type=jnp.float32)                  # [Ep, D]
    msg = jnp.maximum(x_j.astype(jnp.bfloat16) + ee_ref[...], 0)       # bf16
    agg = jnp.dot(dstT_ref[...], msg,
                  preferred_element_type=jnp.float32)                  # [Np, D]

    # (1 + eps) * x + agg, then MLP: Linear -> BN -> ReLU -> Linear, then the
    # outer per-layer BatchNorm.  Bias + folded-BN collapse to one scale/shift
    # per matmul (rows of vecH / vecD).
    vH = vecH_ref[...]                                                 # [8, H]
    vD = vecD_ref[...]                                                 # [8, D]
    pre = (1.0 + eps_ref[l]) * x_in + agg
    h1 = jnp.dot(pre.astype(jnp.bfloat16), wH_ref[0],
                 preferred_element_type=jnp.float32)
    h1 = jnp.maximum(h1 * vH[0:1] + vH[1:2], 0.0)
    h2 = jnp.dot(h1.astype(jnp.bfloat16), wD_ref[0],
                 preferred_element_type=jnp.float32)
    h2 = h2 * vD[0:1] + vD[1:2]

    @pl.when(l < last)
    def _update_state():
        # dropout(relu(h)); dropout == identity in eval mode.
        h_s[...] = jnp.maximum(h2, 0.0)
        # Virtual-node update: vn = ReLU(BN(Lin(ReLU(BN(Lin(add_pool(x_in)+vn))))))
        pooled = jnp.dot(bT_ref[...], x_in_b,
                         preferred_element_type=jnp.float32)           # [Gp, D]
        vt = pooled + vn_s[...]
        v1 = jnp.dot(vt.astype(jnp.bfloat16), wH_ref[1],
                     preferred_element_type=jnp.float32)
        v1 = jnp.maximum(v1 * vH[2:3] + vH[3:4], 0.0)
        v2 = jnp.dot(v1.astype(jnp.bfloat16), wD_ref[1],
                     preferred_element_type=jnp.float32)
        vn_s[...] = jnp.maximum(v2 * vD[2:3] + vD[3:4], 0.0)

    @pl.when(l == last)
    def _finalize():
        # JK == 'last' (no relu on last layer), global add-pool; the mean
        # division happens in the wrapper.
        out_ref[...] = jnp.dot(bT_ref[...], h2.astype(jnp.bfloat16),
                               preferred_element_type=jnp.float32)


# ---------------------------------------------------------------------------
# Wrapper: glue (embedding lookups, one-hot construction) + fused pallas_call
# ---------------------------------------------------------------------------

def _round_up(x, m):
    return max(m, ((x + m - 1) // m) * m)


@functools.partial(jax.jit, static_argnames=("num_graphs",))
def gnn_graph_forward(params, x_feat, edge_index, edge_attr, batch, num_graphs):
    """Pallas-backed forward of GNNGraph (gin, virtual_node=True, JK='last',
    graph_pooling='mean', residual=False, eval mode)."""
    N = x_feat.shape[0]
    E = edge_attr.shape[0]
    D = params["vn_init"].shape[1]
    L = len(params["layers"])
    H = params["layers"][0]["w1"].shape[1]

    # Lane/sublane-dense padding (padded slots use sentinel indices -> all-zero
    # one-hot rows/columns, so they never contaminate real nodes/graphs).
    Np = _round_up(N, 128)
    Ep = _round_up(E, 128)
    Gp = _round_up(num_graphs, 128)

    # --- AtomEncoder: sum of per-feature embedding tables (plain JAX gather) ---
    h0 = jnp.zeros((N, D), jnp.float32)
    for f, tbl in enumerate(params["atom_emb"]):
        h0 = h0 + jnp.take(tbl, x_feat[:, f], axis=0)
    h0p = jnp.zeros((Np, D), jnp.float32).at[:N].set(h0)

    row = edge_index[0].astype(jnp.int32)
    col = edge_index[1].astype(jnp.int32)
    row_p = jnp.full((Ep,), Np, jnp.int32).at[:E].set(row)       # sentinel = Np
    col_p = jnp.full((Ep,), Np, jnp.int32).at[:E].set(col)
    batch_p = jnp.full((Np,), Gp, jnp.int32).at[:N].set(batch.astype(jnp.int32))

    node_ids = jnp.arange(Np, dtype=jnp.int32)
    graph_ids = jnp.arange(Gp, dtype=jnp.int32)
    # One-hots built directly in their consumed orientation (no XLA transpose),
    # bf16 (0/1 exact) so the gather/scatter matmuls run at native MXU rate.
    src = (row_p[:, None] == node_ids[None, :]).astype(jnp.bfloat16)     # [Ep, Np]
    dstT = (node_ids[:, None] == col_p[None, :]).astype(jnp.bfloat16)    # [Np, Ep]
    bnode = (batch_p[:, None] == graph_ids[None, :]).astype(jnp.bfloat16)  # [Np, Gp]
    bT = (graph_ids[:, None] == batch_p[None, :]).astype(jnp.bfloat16)     # [Gp, Np]

    vn0 = jnp.tile(params["vn_init"].astype(jnp.float32), (Gp, 1))       # [Gp, D]

    # --- BondEncoder per layer, stacked [L, Ep, D] ---
    ee_layers = []
    for lp in params["layers"]:
        ee = jnp.zeros((E, D), jnp.float32)
        for f, tbl in enumerate(lp["bond_emb"]):
            ee = ee + jnp.take(tbl, edge_attr[:, f], axis=0)
        ee_layers.append(jnp.zeros((Ep, D), jnp.float32).at[:E].set(ee))
    ee_all = jnp.stack(ee_layers, 0).astype(jnp.bfloat16)

    # --- Pack per-layer params: 2 weight slabs + 2 folded scale/shift slabs ---
    zDH = jnp.zeros((D, H), jnp.float32)
    zHD = jnp.zeros((H, D), jnp.float32)
    wH_l, wD_l, vecH_l, vecD_l = [], [], [], []
    for li, lp in enumerate(params["layers"]):
        vp = params["vn_mlps"][li] if li < L - 1 else None
        wH_l.append(jnp.stack([lp["w1"], vp["w1"] if vp is not None else zDH], 0))
        wD_l.append(jnp.stack([lp["w2"], vp["w2"] if vp is not None else zHD], 0))
        # (x + b) * s + t  ==  x * s + (b * s + t)
        sc1, sh1 = lp["s1"], lp["b1"] * lp["s1"] + lp["t1"]
        sc2, sh2 = lp["so"], lp["b2"] * lp["so"] + lp["to"]
        if vp is not None:
            vsc1, vsh1 = vp["s1"], vp["b1"] * vp["s1"] + vp["t1"]
            vsc2, vsh2 = vp["s2"], vp["b2"] * vp["s2"] + vp["t2"]
        else:
            vsc1, vsh1 = jnp.zeros_like(sc1), jnp.zeros_like(sh1)
            vsc2, vsh2 = jnp.zeros_like(sc2), jnp.zeros_like(sh2)
        zH = jnp.zeros_like(sc1)
        zD = jnp.zeros_like(sc2)
        vecH_l.append(jnp.concatenate([sc1, sh1, vsc1, vsh1, zH, zH, zH, zH], 0))
        vecD_l.append(jnp.concatenate([sc2, sh2, vsc2, vsh2, zD, zD, zD, zD], 0))
    wH_all = jnp.stack(wH_l, 0).astype(jnp.bfloat16)       # [L, 2, D, H]
    wD_all = jnp.stack(wD_l, 0).astype(jnp.bfloat16)       # [L, 2, H, D]
    vecH_all = jnp.stack(vecH_l, 0).astype(jnp.float32)    # [L, 8, H]
    vecD_all = jnp.stack(vecD_l, 0).astype(jnp.float32)    # [L, 8, D]
    eps_all = jnp.asarray([lp["eps"] for lp in params["layers"]], jnp.float32)  # [L]

    # --- BlockSpecs ---
    def full(shp):
        idx = lambda l, n=len(shp): (0,) * n
        try:
            # Layer-invariant, constant index_map -> fetched once; single
            # buffer avoids wasting VMEM on a second copy (matters on v7x).
            return pl.BlockSpec(shp, idx, pipeline_mode=pl.Buffered(1))
        except (TypeError, AttributeError):
            return pl.BlockSpec(shp, idx)

    def perl(shp):
        return pl.BlockSpec((None,) + shp,
                            lambda l, n=len(shp): (l,) + (0,) * n)

    grid_spec = pltpu.PrefetchScalarGridSpec(
        num_scalar_prefetch=0,
        grid=(L,),
        in_specs=[
            full((Np, D)),      # x0
            full((Gp, D)),      # vn0
            full((Ep, Np)),     # src one-hot
            full((Np, Ep)),     # dstT one-hot
            full((Np, Gp)),     # bnode one-hot
            full((Gp, Np)),     # bT one-hot
            pl.BlockSpec(memory_space=pltpu.MemorySpace.SMEM),   # eps [L]
            perl((Ep, D)),      # edge embeddings
            perl((2, D, H)),    # w1 / vn_w1
            perl((2, H, D)),    # w2 / vn_w2
            perl((8, H)),       # folded scale/shift (H-sized)
            perl((8, D)),       # folded scale/shift (D-sized)
        ],
        out_specs=pl.BlockSpec((Gp, D), lambda l: (0, 0)),
        scratch_shapes=[pltpu.VMEM((Np, D), jnp.float32),
                        pltpu.VMEM((Gp, D), jnp.float32)],
    )

    # Explicit VMEM budget (single-buffered invariants + double-buffered
    # per-layer slabs + scratch + elementwise temporaries), with headroom.
    inv_bytes = (Np * D + Gp * D) * 4 + (2 * Ep * Np + 2 * Np * Gp) * 2
    layer_bytes = 2 * ((Ep * D + 2 * D * H + 2 * H * D) * 2 + (8 * H + 8 * D) * 4)
    scratch_bytes = (Np * D + Gp * D) * 4 + 2 * Gp * D * 4
    tmp_bytes = 2 * Ep * D * 4 + 4 * Np * max(D, H) * 4
    footprint = int(1.5 * (inv_bytes + layer_bytes + scratch_bytes + tmp_bytes)) + (2 << 20)
    vmem_limit = min(64 << 20, max(footprint, 32 << 20))

    pooled = pl.pallas_call(
        gnn_fused_kernel,
        grid_spec=grid_spec,
        out_shape=jax.ShapeDtypeStruct((Gp, D), jnp.float32),
        compiler_params=pltpu.CompilerParams(
            dimension_semantics=("arbitrary",),   # layer loop carries state
            vmem_limit_bytes=vmem_limit),
    )(h0p, vn0, src, dstT, bnode, bT, eps_all, ee_all,
      wH_all, wD_all, vecH_all, vecD_all)

    # global_mean_pool: divide add-pooled result by per-graph node counts.
    counts = jax.ops.segment_sum(jnp.ones((N,), jnp.float32), batch,
                                 num_segments=num_graphs)
    counts = jnp.maximum(counts, 1.0)
    return pooled[:num_graphs] / counts[:, None]


# ---------------------------------------------------------------------------
# Parameter init (deterministic, synthetic; eval-mode BN folded)
# ---------------------------------------------------------------------------

def fold_bn(gamma, beta, mean, var, eps=1e-5):
    scale = gamma / jnp.sqrt(var + eps)
    shift = beta - mean * scale
    return scale[None, :], shift[None, :]


def init_params(key, num_layer, D, H, vocab_atom, n_atom_feat, vocab_bond, n_bond_feat):
    ks = iter(jax.random.split(key, 512))
    nrm = lambda shape, s=0.05: s * jax.random.normal(next(ks), shape, jnp.float32)

    params = {
        "atom_emb": [nrm((vocab_atom, D)) for _ in range(n_atom_feat)],
        "vn_init": jnp.zeros((1, D), jnp.float32),   # Embedding(1, D) init'd to 0
        "layers": [],
        "vn_mlps": [],
    }
    for _ in range(num_layer):
        bn1_s, bn1_t = fold_bn(1.0 + nrm((H,)), nrm((H,)), jnp.zeros(H), jnp.ones(H))
        bno_s, bno_t = fold_bn(1.0 + nrm((D,)), nrm((D,)), jnp.zeros(D), jnp.ones(D))
        params["layers"].append({
            "bond_emb": [nrm((vocab_bond, D)) for _ in range(n_bond_feat)],
            "eps": 0.0,                                    # nn.Parameter([0])
            "w1": nrm((D, H)), "b1": nrm((1, H)), "s1": bn1_s, "t1": bn1_t,
            "w2": nrm((H, D)), "b2": nrm((1, D)), "so": bno_s, "to": bno_t,
        })
    for _ in range(num_layer - 1):
        bn1_s, bn1_t = fold_bn(1.0 + nrm((H,)), nrm((H,)), jnp.zeros(H), jnp.ones(H))
        bn2_s, bn2_t = fold_bn(1.0 + nrm((D,)), nrm((D,)), jnp.zeros(D), jnp.ones(D))
        params["vn_mlps"].append({
            "w1": nrm((D, H)), "b1": nrm((1, H)), "s1": bn1_s, "t1": bn1_t,
            "w2": nrm((H, D)), "b2": nrm((1, D)), "s2": bn2_s, "t2": bn2_t,
        })
    return params


# ---------------------------------------------------------------------------
# Pure-JAX f32 reference (same math) for a sanity check
# ---------------------------------------------------------------------------

def gnn_graph_reference(params, x_feat, edge_index, edge_attr, batch, num_graphs):
    N = x_feat.shape[0]
    D = params["vn_init"].shape[1]
    num_layer = len(params["layers"])
    h = jnp.zeros((N, D), jnp.float32)
    for f, tbl in enumerate(params["atom_emb"]):
        h = h + jnp.take(tbl, x_feat[:, f], axis=0)
    row, col = edge_index[0], edge_index[1]
    vn = jnp.tile(params["vn_init"], (num_graphs, 1))
    for layer in range(num_layer):
        lp = params["layers"][layer]
        ee = jnp.zeros((edge_attr.shape[0], D), jnp.float32)
        for f, tbl in enumerate(lp["bond_emb"]):
            ee = ee + jnp.take(tbl, edge_attr[:, f], axis=0)
        h_in = h + vn[batch]
        msg = jnp.maximum(h_in[row] + ee, 0.0)
        agg = jax.ops.segment_sum(msg, col, num_segments=N)
        pre = (1.0 + lp["eps"]) * h_in + agg
        h1 = jnp.maximum((pre @ lp["w1"] + lp["b1"]) * lp["s1"] + lp["t1"], 0.0)
        h2 = (h1 @ lp["w2"] + lp["b2"]) * lp["so"] + lp["to"]
        if layer != num_layer - 1:
            h2 = jnp.maximum(h2, 0.0)
        if layer < num_layer - 1:
            vp = params["vn_mlps"][layer]
            vt = jax.ops.segment_sum(h_in, batch, num_segments=num_graphs) + vn
            v1 = jnp.maximum((vt @ vp["w1"] + vp["b1"]) * vp["s1"] + vp["t1"], 0.0)
            vn = jnp.maximum((v1 @ vp["w2"] + vp["b2"]) * vp["s2"] + vp["t2"], 0.0)
        h = h2
    counts = jax.ops.segment_sum(jnp.ones((N,), jnp.float32), batch,
                                 num_segments=num_graphs)
    pooled = jax.ops.segment_sum(h, batch, num_segments=num_graphs)
    return pooled / counts[:, None]


# ---------------------------------------------------------------------------

if __name__ == "__main__":
    # small shapes consistent with the module (num_layer >= 2 required)
    NUM_LAYER = 3
    D = 128                # emb_dim
    H = 2 * D
    N = 64                 # nodes
    E = 128                # edges
    G = 4                  # graphs
    N_ATOM_FEAT, VOCAB_ATOM = 9, 16
    N_BOND_FEAT, VOCAB_BOND = 3, 8

    key = jax.random.PRNGKey(0)
    k_p, k_x, k_e, k_r, k_c = jax.random.split(key, 5)

    params = init_params(k_p, NUM_LAYER, D, H, VOCAB_ATOM, N_ATOM_FEAT,
                         VOCAB_BOND, N_BOND_FEAT)

    x_feat = jax.random.randint(k_x, (N, N_ATOM_FEAT), 0, VOCAB_ATOM, jnp.int32)
    edge_attr = jax.random.randint(k_e, (E, N_BOND_FEAT), 0, VOCAB_BOND, jnp.int32)
    batch = jnp.repeat(jnp.arange(G, dtype=jnp.int32), N // G)
    # keep edges within their graph (realistic batched-graph structure)
    nodes_per_graph = N // G
    e_graph = jax.random.randint(k_r, (E,), 0, G, jnp.int32)
    e_src = jax.random.randint(k_c, (E,), 0, nodes_per_graph, jnp.int32)
    e_dst = jax.random.randint(jax.random.fold_in(k_c, 1), (E,), 0,
                               nodes_per_graph, jnp.int32)
    edge_index = jnp.stack([e_graph * nodes_per_graph + e_src,
                            e_graph * nodes_per_graph + e_dst], axis=0)

    # TODO(synk): training-mode dropout / batch-stat BatchNorm not implemented
    # (eval semantics only, matching the reference).
    out = gnn_graph_forward(params, x_feat, edge_index, edge_attr, batch, G)
    out = jax.block_until_ready(out)

    ref = jax.block_until_ready(
        gnn_graph_reference(params, x_feat, edge_index, edge_attr, batch, G))

    assert out.shape == (G, D)
    assert jnp.allclose(out, ref, rtol=2e-2, atol=2e-2), (
        f"max abs err {float(jnp.max(jnp.abs(out - ref)))}")
    print("KERNEL_OK")
</pallas_src>

<mosaic_0001>
module attributes {stable_mosaic.version = 11 : i64} {
  func.func @gnn_fused_kernel(%arg0: i32, %arg1: memref<128x128xf32, #tpu.memory_space<vmem>>, %arg2: memref<128x128xf32, #tpu.memory_space<vmem>>, %arg3: memref<128x128xbf16, #tpu.memory_space<vmem>>, %arg4: memref<128x128xbf16, #tpu.memory_space<vmem>>, %arg5: memref<128x128xbf16, #tpu.memory_space<vmem>>, %arg6: memref<128x128xbf16, #tpu.memory_space<vmem>>, %arg7: memref<3xf32, #tpu.memory_space<smem>>, %arg8: memref<1x128x128xbf16, #tpu.memory_space<vmem>>, %arg9: memref<1x2x128x256xbf16, #tpu.memory_space<vmem>>, %arg10: memref<1x2x256x128xbf16, #tpu.memory_space<vmem>>, %arg11: memref<1x8x256xf32, #tpu.memory_space<vmem>>, %arg12: memref<1x8x128xf32, #tpu.memory_space<vmem>>, %arg13: memref<128x128xf32, #tpu.memory_space<vmem>>, %arg14: memref<128x128xf32, #tpu.memory_space<vmem>>, %arg15: memref<128x128xf32, #tpu.memory_space<vmem>>) attributes {dimension_semantics = [#tpu.dimension_semantics<arbitrary>], iteration_bounds = array<i64: 3>, scalar_prefetch = 0 : i64, scratch_operands = 2 : i64, tpu.core_type = #tpu.core_type<tc>, window_params = [{pipeline_mode = #tpu.pipeline_mode<synchronous>, transform_indices = @transform_0, window_bounds = array<i64: 128, 128>}, {pipeline_mode = #tpu.pipeline_mode<synchronous>, transform_indices = @transform_1, window_bounds = array<i64: 128, 128>}, {pipeline_mode = #tpu.pipeline_mode<synchronous>, transform_indices = @transform_2, window_bounds = array<i64: 128, 128>}, {pipeline_mode = #tpu.pipeline_mode<synchronous>, transform_indices = @transform_3, window_bounds = array<i64: 128, 128>}, {pipeline_mode = #tpu.pipeline_mode<synchronous>, transform_indices = @transform_4, window_bounds = array<i64: 128, 128>}, {pipeline_mode = #tpu.pipeline_mode<synchronous>, transform_indices = @transform_5, window_bounds = array<i64: 128, 128>}, {transform_indices = @transform_6, window_bounds = array<i64: 3>}, {transform_indices = @transform_7, window_bounds = array<i64: 1, 128, 128>}, {transform_indices = @transform_8, window_bounds = array<i64: 1, 2, 128, 256>}, {transform_indices = @transform_9, window_bounds = array<i64: 1, 2, 256, 128>}, {transform_indices = @transform_10, window_bounds = array<i64: 1, 8, 256>}, {transform_indices = @transform_11, window_bounds = array<i64: 1, 8, 128>}, {pipeline_mode = #tpu.pipeline_mode<synchronous>, transform_indices = @transform_12, window_bounds = array<i64: 128, 128>}]} {
    %c0_i32 = arith.constant 0 : i32
    %0 = arith.cmpi eq, %arg0, %c0_i32 : i32
    %1 = arith.extui %0 : i1 to i32
    %c0_i32_0 = arith.constant 0 : i32
    %2 = arith.cmpi ne, %1, %c0_i32_0 : i32
    scf.if %2 {
      %c0_37 = arith.constant 0 : index
      %c0_38 = arith.constant 0 : index
      %58 = vector.load %arg1[%c0_37, %c0_38] : memref<128x128xf32, #tpu.memory_space<vmem>>, vector<128x128xf32>
      %c0_39 = arith.constant 0 : index
      %c0_40 = arith.constant 0 : index
      %59 = vector.load %arg14[%c0_39, %c0_40] : memref<128x128xf32, #tpu.memory_space<vmem>>, vector<128x128xf32>
      tpu.vector_store %arg14[%c0_39, %c0_40], %58 {strides = array<i32>} : memref<128x128xf32, #tpu.memory_space<vmem>>, vector<128x128xf32>,
      %c0_41 = arith.constant 0 : index
      %c0_42 = arith.constant 0 : index
      %60 = vector.load %arg2[%c0_41, %c0_42] : memref<128x128xf32, #tpu.memory_space<vmem>>, vector<128x128xf32>
      %c0_43 = arith.constant 0 : index
      %c0_44 = arith.constant 0 : index
      %61 = vector.load %arg15[%c0_43, %c0_44] : memref<128x128xf32, #tpu.memory_space<vmem>>, vector<128x128xf32>
      tpu.vector_store %arg15[%c0_43, %c0_44], %60 {strides = array<i32>} : memref<128x128xf32, #tpu.memory_space<vmem>>, vector<128x128xf32>,
    } else {
    }
    %c0 = arith.constant 0 : index
    %c0_1 = arith.constant 0 : index
    %3 = vector.load %arg14[%c0, %c0_1] : memref<128x128xf32, #tpu.memory_space<vmem>>, vector<128x128xf32>
    %c0_2 = arith.constant 0 : index
    %c0_3 = arith.constant 0 : index
    %4 = vector.load %arg5[%c0_2, %c0_3] : memref<128x128xbf16, #tpu.memory_space<vmem>>, vector<128x128xbf16>
    %c0_4 = arith.constant 0 : index
    %c0_5 = arith.constant 0 : index
    %5 = vector.load %arg15[%c0_4, %c0_5] : memref<128x128xf32, #tpu.memory_space<vmem>>, vector<128x128xf32>
    %6 = arith.truncf %5 : vector<128x128xf32> to vector<128x128xbf16>
    %cst = arith.constant dense<0.000000e+00> : vector<128x128xf32>
    %7 = tpu.matmul %4, %6, %cst {dimension_numbers = #tpu.dot_dimension_numbers<[1], [0], [0], [1], [0, 0, 1, 1], [], []>} : vector<128x128xbf16>, vector<128x128xbf16>, vector<128x128xf32> -> vector<128x128xf32>
    %8 = arith.addf %3, %7 : vector<128x128xf32>
    %9 = arith.truncf %8 : vector<128x128xf32> to vector<128x128xbf16>
    %c0_6 = arith.constant 0 : index
    %c0_7 = arith.constant 0 : index
    %10 = vector.load %arg3[%c0_6, %c0_7] : memref<128x128xbf16, #tpu.memory_space<vmem>>, vector<128x128xbf16>
    %cst_8 = arith.constant dense<0.000000e+00> : vector<128x128xf32>
    %11 = tpu.matmul %10, %9, %cst_8 {dimension_numbers = #tpu.dot_dimension_numbers<[1], [0], [0], [1], [0, 0, 1, 1], [], []>} : vector<128x128xbf16>, vector<128x128xbf16>, vector<128x128xf32> -> vector<128x128xf32>
    %12 = arith.truncf %11 : vector<128x128xf32> to vector<128x128xbf16>
    %c0_9 = arith.constant 0 : index
    %c0_10 = arith.constant 0 : index
    %c0_11 = arith.constant 0 : index
    %13 = vector.load %arg8[%c0_9, %c0_10, %c0_11] : memref<1x128x128xbf16, #tpu.memory_space<vmem>>, vector<1x128x128xbf16>
    %14 = vector.shape_cast %13 : vector<1x128x128xbf16> to vector<128x128xbf16>
    %15 = arith.addf %12, %14 : vector<128x128xbf16>
    %cst_12 = arith.constant 0.000000e+00 : bf16
    %16 = vector.broadcast %cst_12 : bf16 to vector<128x128xbf16>
    %17 = arith.maximumf %15, %16 : vector<128x128xbf16>
    %c0_13 = arith.constant 0 : index
    %c0_14 = arith.constant 0 : index
    %18 = vector.load %arg4[%c0_13, %c0_14] : memref<128x128xbf16, #tpu.memory_space<vmem>>, vector<128x128xbf16>
    %cst_15 = arith.constant dense<0.000000e+00> : vector<128x128xf32>
    %19 = tpu.matmul %18, %17, %cst_15 {dimension_numbers = #tpu.dot_dimension_numbers<[1], [0], [0], [1], [0, 0, 1, 1], [], []>} : vector<128x128xbf16>, vector<128x128xbf16>, vector<128x128xf32> -> vector<128x128xf32>
    %c0_16 = arith.constant 0 : index
    %c0_17 = arith.constant 0 : index
    %c0_18 = arith.constant 0 : index
    %20 = vector.load %arg11[%c0_16, %c0_17, %c0_18] : memref<1x8x256xf32, #tpu.memory_space<vmem>>, vector<1x8x256xf32>
    %21 = vector.shape_cast %20 : vector<1x8x256xf32> to vector<8x256xf32>
    %c0_19 = arith.constant 0 : index
    %c0_20 = arith.constant 0 : index
    %c0_21 = arith.constant 0 : index
    %22 = vector.load %arg12[%c0_19, %c0_20, %c0_21] : memref<1x8x128xf32, #tpu.memory_space<vmem>>, vector<1x8x128xf32>
    %23 = vector.shape_cast %22 : vector<1x8x128xf32> to vector<8x128xf32>
    %24 = arith.index_cast %arg0 : i32 to index
    %25 = memref.load %arg7[%24] : memref<3xf32, #tpu.memory_space<smem>>
    %cst_22 = arith.constant 1.000000e+00 : f32
    %26 = arith.addf %cst_22, %25 : f32
    %27 = vector.broadcast %26 : f32 to vector<128x128xf32>
    %28 = arith.mulf %27, %8 : vector<128x128xf32>
    %29 = arith.addf %28, %19 : vector<128x128xf32>
    %30 = arith.truncf %29 : vector<128x128xf32> to vector<128x128xbf16>
    %c0_23 = arith.constant 0 : index
    %c0_24 = arith.constant 0 : index
    %c0_25 = arith.constant 0 : index
    %c0_26 = arith.constant 0 : index
    %31 = vector.load %arg9[%c0_23, %c0_24, %c0_25, %c0_26] : memref<1x2x128x256xbf16, #tpu.memory_space<vmem>>, vector<1x1x128x256xbf16>
    %32 = vector.shape_cast %31 : vector<1x1x128x256xbf16> to vector<128x256xbf16>
    %cst_27 = arith.constant dense<0.000000e+00> : vector<128x256xf32>
    %33 = tpu.matmul %30, %32, %cst_27 {dimension_numbers = #tpu.dot_dimension_numbers<[1], [0], [0], [1], [0, 0, 1, 1], [], []>} : vector<128x128xbf16>, vector<128x256xbf16>, vector<128x256xf32> -> vector<128x256xf32>
    %34 = vector.extract_strided_slice %21 {offsets = [0, 0], sizes = [1, 256], strides = [1, 1]} : vector<8x256xf32> to vector<1x256xf32>
    %35 = vector.broadcast %34 : vector<1x256xf32> to vector<128x256xf32>
    %36 = arith.mulf %33, %35 : vector<128x256xf32>
    %37 = vector.extract_strided_slice %21 {offsets = [1, 0], sizes = [1, 256], strides = [1, 1]} : vector<8x256xf32> to vector<1x256xf32>
    %38 = vector.broadcast %37 : vector<1x256xf32> to vector<128x256xf32>
    %39 = arith.addf %36, %38 : vector<128x256xf32>
    %cst_28 = arith.constant 0.000000e+00 : f32
    %40 = vector.broadcast %cst_28 : f32 to vector<128x256xf32>
    %41 = arith.maximumf %39, %40 : vector<128x256xf32>
    %42 = arith.truncf %41 : vector<128x256xf32> to vector<128x256xbf16>
    %c0_29 = arith.constant 0 : index
    %c0_30 = arith.constant 0 : index
    %c0_31 = arith.constant 0 : index
    %c0_32 = arith.constant 0 : index
    %43 = vector.load %arg10[%c0_29, %c0_30, %c0_31, %c0_32] : memref<1x2x256x128xbf16, #tpu.memory_space<vmem>>, vector<1x1x256x128xbf16>
    %44 = vector.shape_cast %43 : vector<1x1x256x128xbf16> to vector<256x128xbf16>
    %cst_33 = arith.constant dense<0.000000e+00> : vector<128x128xf32>
    %45 = tpu.matmul %42, %44, %cst_33 {dimension_numbers = #tpu.dot_dimension_numbers<[1], [0], [0], [1], [0, 0, 1, 1], [], []>} : vector<128x256xbf16>, vector<256x128xbf16>, vector<128x128xf32> -> vector<128x128xf32>
    %46 = vector.extract_strided_slice %23 {offsets = [0, 0], sizes = [1, 128], strides = [1, 1]} : vector<8x128xf32> to vector<1x128xf32>
    %47 = vector.broadcast %46 : vector<1x128xf32> to vector<128x128xf32>
    %48 = arith.mulf %45, %47 : vector<128x128xf32>
    %49 = vector.extract_strided_slice %23 {offsets = [1, 0], sizes = [1, 128], strides = [1, 1]} : vector<8x128xf32> to vector<1x128xf32>
    %50 = vector.broadcast %49 : vector<1x128xf32> to vector<128x128xf32>
    %51 = arith.addf %48, %50 : vector<128x128xf32>
    %c2_i32 = arith.constant 2 : i32
    %52 = arith.cmpi slt, %arg0, %c2_i32 : i32
    %53 = arith.extui %52 : i1 to i32
    %c0_i32_34 = arith.constant 0 : i32
    %54 = arith.cmpi ne, %53, %c0_i32_34 : i32
    scf.if %54 {
      %cst_37 = arith.constant 0.000000e+00 : f32
      %58 = vector.broadcast %cst_37 : f32 to vector<128x128xf32>
      %59 = arith.maximumf %51, %58 : vector<128x128xf32>
      %c0_38 = arith.constant 0 : index
      %c0_39 = arith.constant 0 : index
      %60 = vector.load %arg14[%c0_38, %c0_39] : memref<128x128xf32, #tpu.memory_space<vmem>>, vector<128x128xf32>
      tpu.vector_store %arg14[%c0_38, %c0_39], %59 {strides = array<i32>} : memref<128x128xf32, #tpu.memory_space<vmem>>, vector<128x128xf32>,
      %c0_40 = arith.constant 0 : index
      %c0_41 = arith.constant 0 : index
      %61 = vector.load %arg6[%c0_40, %c0_41] : memref<128x128xbf16, #tpu.memory_space<vmem>>, vector<128x128xbf16>
      %cst_42 = arith.constant dense<0.000000e+00> : vector<128x128xf32>
      %62 = tpu.matmul %61, %9, %cst_42 {dimension_numbers = #tpu.dot_dimension_numbers<[1], [0], [0], [1], [0, 0, 1, 1], [], []>} : vector<128x128xbf16>, vector<128x128xbf16>, vector<128x128xf32> -> vector<128x128xf32>
      %c0_43 = arith.constant 0 : index
      %c0_44 = arith.constant 0 : index
      %63 = vector.load %arg15[%c0_43, %c0_44] : memref<128x128xf32, #tpu.memory_space<vmem>>, vector<128x128xf32>
      %64 = arith.addf %62, %63 : vector<128x128xf32>
      %65 = arith.truncf %64 : vector<128x128xf32> to vector<128x128xbf16>
      %c0_45 = arith.constant 0 : index
      %c1 = arith.constant 1 : index
      %c0_46 = arith.constant 0 : index
      %c0_47 = arith.constant 0 : index
      %66 = vector.load %arg9[%c0_45, %c1, %c0_46, %c0_47] : memref<1x2x128x256xbf16, #tpu.memory_space<vmem>>, vector<1x1x128x256xbf16>
      %67 = vector.shape_cast %66 : vector<1x1x128x256xbf16> to vector<128x256xbf16>
      %cst_48 = arith.constant dense<0.000000e+00> : vector<128x256xf32>
      %68 = tpu.matmul %65, %67, %cst_48 {dimension_numbers = #tpu.dot_dimension_numbers<[1], [0], [0], [1], [0, 0, 1, 1], [], []>} : vector<128x128xbf16>, vector<128x256xbf16>, vector<128x256xf32> -> vector<128x256xf32>
      %69 = vector.extract_strided_slice %21 {offsets = [2, 0], sizes = [1, 256], strides = [1, 1]} : vector<8x256xf32> to vector<1x256xf32>
      %70 = vector.broadcast %69 : vector<1x256xf32> to vector<128x256xf32>
      %71 = arith.mulf %68, %70 : vector<128x256xf32>
      %72 = vector.extract_strided_slice %21 {offsets = [3, 0], sizes = [1, 256], strides = [1, 1]} : vector<8x256xf32> to vector<1x256xf32>
      %73 = vector.broadcast %72 : vector<1x256xf32> to vector<128x256xf32>
      %74 = arith.addf %71, %73 : vector<128x256xf32>
      %cst_49 = arith.constant 0.000000e+00 : f32
      %75 = vector.broadcast %cst_49 : f32 to vector<128x256xf32>
      %76 = arith.maximumf %74, %75 : vector<128x256xf32>
      %77 = arith.truncf %76 : vector<128x256xf32> to vector<128x256xbf16>
      %c0_50 = arith.constant 0 : index
      %c1_51 = arith.constant 1 : index
      %c0_52 = arith.constant 0 : index
      %c0_53 = arith.constant 0 : index
      %78 = vector.load %arg10[%c0_50, %c1_51, %c0_52, %c0_53] : memref<1x2x256x128xbf16, #tpu.memory_space<vmem>>, vector<1x1x256x128xbf16>
      %79 = vector.shape_cast %78 : vector<1x1x256x128xbf16> to vector<256x128xbf16>
      %cst_54 = arith.constant dense<0.000000e+00> : vector<128x128xf32>
      %80 = tpu.matmul %77, %79, %cst_54 {dimension_numbers = #tpu.dot_dimension_numbers<[1], [0], [0], [1], [0, 0, 1, 1], [], []>} : vector<128x256xbf16>, vector<256x128xbf16>, vector<128x128xf32> -> vector<128x128xf32>
      %81 = vector.extract_strided_slice %23 {offsets = [2, 0], sizes = [1, 128], strides = [1, 1]} : vector<8x128xf32> to vector<1x128xf32>
      %82 = vector.broadcast %81 : vector<1x128xf32> to vector<128x128xf32>
      %83 = arith.mulf %80, %82 : vector<128x128xf32>
      %84 = vector.extract_strided_slice %23 {offsets = [3, 0], sizes = [1, 128], strides = [1, 1]} : vector<8x128xf32> to vector<1x128xf32>
      %85 = vector.broadcast %84 : vector<1x128xf32> to vector<128x128xf32>
      %86 = arith.addf %83, %85 : vector<128x128xf32>
      %cst_55 = arith.constant 0.000000e+00 : f32
      %87 = vector.broadcast %cst_55 : f32 to vector<128x128xf32>
      %88 = arith.maximumf %86, %87 : vector<128x128xf32>
      %c0_56 = arith.constant 0 : index
      %c0_57 = arith.constant 0 : index
      %89 = vector.load %arg15[%c0_56, %c0_57] : memref<128x128xf32, #tpu.memory_space<vmem>>, vector<128x128xf32>
      tpu.vector_store %arg15[%c0_56, %c0_57], %88 {strides = array<i32>} : memref<128x128xf32, #tpu.memory_space<vmem>>, vector<128x128xf32>,
    } else {
    }
    %c2_i32_35 = arith.constant 2 : i32
    %55 = arith.cmpi eq, %arg0, %c2_i32_35 : i32
    %56 = arith.extui %55 : i1 to i32
    %c0_i32_36 = arith.constant 0 : i32
    %57 = arith.cmpi ne, %56, %c0_i32_36 : i32
    scf.if %57 {
      %c0_37 = arith.constant 0 : index
      %c0_38 = arith.constant 0 : index
      %58 = vector.load %arg6[%c0_37, %c0_38] : memref<128x128xbf16, #tpu.memory_space<vmem>>, vector<128x128xbf16>
      %59 = arith.truncf %51 : vector<128x128xf32> to vector<128x128xbf16>
      %cst_39 = arith.constant dense<0.000000e+00> : vector<128x128xf32>
      %60 = tpu.matmul %58, %59, %cst_39 {dimension_numbers = #tpu.dot_dimension_numbers<[1], [0], [0], [1], [0, 0, 1, 1], [], []>} : vector<128x128xbf16>, vector<128x128xbf16>, vector<128x128xf32> -> vector<128x128xf32>
      %c0_40 = arith.constant 0 : index
      %c0_41 = arith.constant 0 : index
      %61 = vector.load %arg13[%c0_40, %c0_41] : memref<128x128xf32, #tpu.memory_space<vmem>>, vector<128x128xf32>
      tpu.vector_store %arg13[%c0_40, %c0_41], %60 {strides = array<i32>} : memref<128x128xf32, #tpu.memory_space<vmem>>, vector<128x128xf32>,
    } else {
    }
    return
  }
  func.func @transform_0(%arg0: i32) -> (i32, i32) {
    %c0_i32 = arith.constant 0 : i32
    %c0_i32_0 = arith.constant 0 : i32
    %c0_i32_1 = arith.constant 0 : i32
    return %c0_i32, %c0_i32_0 : i32, i32
  }
  func.func @transform_1(%arg0: i32) -> (i32, i32) {
    %c0_i32 = arith.constant 0 : i32
    %c0_i32_0 = arith.constant 0 : i32
    %c0_i32_1 = arith.constant 0 : i32
    return %c0_i32, %c0_i32_0 : i32, i32
  }
  func.func @transform_2(%arg0: i32) -> (i32, i32) {
    %c0_i32 = arith.constant 0 : i32
    %c0_i32_0 = arith.constant 0 : i32
    %c0_i32_1 = arith.constant 0 : i32
    return %c0_i32, %c0_i32_0 : i32, i32
  }
  func.func @transform_3(%arg0: i32) -> (i32, i32) {
    %c0_i32 = arith.constant 0 : i32
    %c0_i32_0 = arith.constant 0 : i32
    %c0_i32_1 = arith.constant 0 : i32
    return %c0_i32, %c0_i32_0 : i32, i32
  }
  func.func @transform_4(%arg0: i32) -> (i32, i32) {
    %c0_i32 = arith.constant 0 : i32
    %c0_i32_0 = arith.constant 0 : i32
    %c0_i32_1 = arith.constant 0 : i32
    return %c0_i32, %c0_i32_0 : i32, i32
  }
  func.func @transform_5(%arg0: i32) -> (i32, i32) {
    %c0_i32 = arith.constant 0 : i32
    %c0_i32_0 = arith.constant 0 : i32
    %c0_i32_1 = arith.constant 0 : i32
    return %c0_i32, %c0_i32_0 : i32, i32
  }
  func.func @transform_6(%arg0: i32) -> i32 {
    %c0_i32 = arith.constant 0 : i32
    %c0_i32_0 = arith.constant 0 : i32
    return %c0_i32 : i32
  }
  func.func @transform_7(%arg0: i32) -> (i32, i32, i32) {
    %c0_i32 = arith.constant 0 : i32
    %c0_i32_0 = arith.constant 0 : i32
    %c0_i32_1 = arith.constant 0 : i32
    return %arg0, %c0_i32, %c0_i32_0 : i32, i32, i32
  }
  func.func @transform_8(%arg0: i32) -> (i32, i32, i32, i32) {
    %c0_i32 = arith.constant 0 : i32
    %c0_i32_0 = arith.constant 0 : i32
    %c0_i32_1 = arith.constant 0 : i32
    %c0_i32_2 = arith.constant 0 : i32
    return %arg0, %c0_i32, %c0_i32_0, %c0_i32_1 : i32, i32, i32, i32
  }
  func.func @transform_9(%arg0: i32) -> (i32, i32, i32, i32) {
    %c0_i32 = arith.constant 0 : i32
    %c0_i32_0 = arith.constant 0 : i32
    %c0_i32_1 = arith.constant 0 : i32
    %c0_i32_2 = arith.constant 0 : i32
    return %arg0, %c0_i32, %c0_i32_0, %c0_i32_1 : i32, i32, i32, i32
  }
  func.func @transform_10(%arg0: i32) -> (i32, i32, i32) {
    %c0_i32 = arith.constant 0 : i32
    %c0_i32_0 = arith.constant 0 : i32
    %c0_i32_1 = arith.constant 0 : i32
    return %arg0, %c0_i32, %c0_i32_0 : i32, i32, i32
  }
  func.func @transform_11(%arg0: i32) -> (i32, i32, i32) {
    %c0_i32 = arith.constant 0 : i32
    %c0_i32_0 = arith.constant 0 : i32
    %c0_i32_1 = arith.constant 0 : i32
    return %arg0, %c0_i32, %c0_i32_0 : i32, i32, i32
  }
  func.func @transform_12(%arg0: i32) -> (i32, i32) {
    %c0_i32 = arith.constant 0 : i32
    %c0_i32_0 = arith.constant 0 : i32
    %c0_i32_1 = arith.constant 0 : i32
    return %c0_i32, %c0_i32_0 : i32, i32
  }
}

</mosaic_0001>

<llo_original>
// kernel: gnn_graph_forward.1
$region0: #{gnn_graph_forward.1}
  #allocation0 [shape = 'u32[]', space=smem, size = 0x4, offset = 0x4, fixed_abs, tag = 'smem constant byte address 0x4 - core index']
  #allocation1 [shape = 'u32[72,128]{1,0:T(1,128)}', space=vmem, size = 0x9000, scoped, tag = 'internal scratch']
  #allocation2 [shape = 'f32[128,128]{1,0:T(8,128)}', space=vmem, size = 0x10000, scoped, tag = 'scratch operand']
  #allocation3 [shape = 'f32[128,128]{1,0:T(8,128)}', space=vmem, size = 0x10000, scoped, tag = 'scratch operand']
  %s0 = inlined_call_operand.vmem [shape: f32[128,128], index: 0, kind: input, shape index: {}]
  %s1 = inlined_call_operand.vmem [shape: f32[128,128], index: 1, kind: input, shape index: {}]
  %s2 = inlined_call_operand.vmem [shape: bf16[128,128], index: 2, kind: input, shape index: {}]
  %s3 = inlined_call_operand.vmem [shape: bf16[128,128], index: 3, kind: input, shape index: {}]
  %s4 = inlined_call_operand.vmem [shape: bf16[128,128], index: 4, kind: input, shape index: {}]
  %s5 = inlined_call_operand.vmem [shape: bf16[128,128], index: 5, kind: input, shape index: {}]
  %s6 = inlined_call_operand.vmem [shape: f32[3], index: 6, kind: input, shape index: {}]
  %s7 = inlined_call_operand.vmem [shape: bf16[3,128,128], index: 7, kind: input, shape index: {}]
  %s8 = inlined_call_operand.vmem [shape: bf16[3,2,128,256], index: 8, kind: input, shape index: {}]
  %s9 = inlined_call_operand.vmem [shape: bf16[3,2,256,128], index: 9, kind: input, shape index: {}]
  %s10 = inlined_call_operand.vmem [shape: f32[3,8,256], index: 10, kind: input, shape index: {}]
  %s11 = inlined_call_operand.vmem [shape: f32[3,8,128], index: 11, kind: input, shape index: {}]
  %s12 = inlined_call_operand.vmem [shape: f32[128,128], index: 12, kind: output, shape index: {}]
  %s13 = sld [smem:[#allocation0]]
  $region97: #{gnn_graph_forward.1} parent=0
    _
  %s15 = ssub.s32 1, %s13
  %s16 = scalar_select 0, %s15, %s13
  $region1: #{gnn_graph_forward.1} parent=0
    #allocation4 [shape = 'u8[512]{0}', space=smem, size = 0x200, scoped, tag = 'input window, operand 6, single buffered']
    #allocation5 [shape = 's32[2]{0}', space=sflag, size = 0x8, scoped, tag = 'scoped memory for gnn_graph_forward.1']
    %17 = vsyncpa [#allocation5], 0
    loop: start=0, step=1, limit=5
    $region2: #{gnn_graph_forward.1} parent=1 // loop_pre_header
      _
    $region3: #{gnn_graph_forward.1} parent=1 // loop_header
      %s19 = sphi 0, %s23
      %p20 = scmp.ge.s32.totalorder %s19, 5
      %s27 = sphi 0, %s27
      %s29 = sphi 0, %s27
      %s30 = sphi 0, %s29
      %s44 = sphi 0, %s30
      %s48 = sphi 0, %s48
      %s50 = sphi 0, %s48
      %s51 = sphi 0, %s50
      %s65 = sphi 0, %s51
      %s69 = sphi 0, %s69
      %s71 = sphi 0, %s69
      %s72 = sphi 0, %s71
      %s86 = sphi 0, %s72
      %s90 = sphi 0, %s90
      %s92 = sphi 0, %s90
      %s93 = sphi 0, %s92
      %s107 = sphi 0, %s93
      %s111 = sphi 0, %s111
      %s113 = sphi 0, %s111
      %s114 = sphi 0, %s113
      %s128 = sphi 0, %s114
      %s132 = sphi 0, %s132
      %s134 = sphi 0, %s132
      %s135 = sphi 0, %s134
      %s149 = sphi 0, %s135
      %s153 = sphi 0, %s153
      %s155 = sphi 0, %s153
      %s156 = sphi 0, %s155
      %s170 = sphi 0, %s156
      %s176 = sphi 0, %s178
      %s179 = sphi 0, %s176
      %s180 = sphi 0, %s179
      %s196 = sphi 0, %s180
      %s202 = sphi 0, %s204
      %s205 = sphi 0, %s202
      %s206 = sphi 0, %s205
      %s222 = sphi 0, %s206
      %s228 = sphi 0, %s230
      %s231 = sphi 0, %s228
      %s232 = sphi 0, %s231
      %s248 = sphi 0, %s232
      %s254 = sphi 0, %s256
      %s257 = sphi 0, %s254
      %s258 = sphi 0, %s257
      %s274 = sphi 0, %s258
      %s280 = sphi 0, %s282
      %s283 = sphi 0, %s280
      %s284 = sphi 0, %s283
      %s300 = sphi 0, %s284
      %s304 = sphi 0, %s304
      %s306 = sphi 0, %s304
      %s307 = sphi 0, %s306
      %s321 = sphi 0, %s307
    $region4: #{gnn_graph_forward.1} parent=1 // loop_header_branch
      %22 = sbr.rel (%p20) target = $region8
    $region5: #{gnn_graph_forward.1} parent=1 // loop_body
      %s24 = ssub.s32 %s19, 1
      %s25 = ssub.s32 %s19, 2
      %s26 = sadd.s32 %s19, 1
      %s28 = sadd.s32 %s27, 1
      %p31 = scmp.eq.s32.totalorder %s19, 2
      %p32 = scmp.ne.s32.totalorder %s27, %s29
      %p33 = scmp.eq.s32.totalorder %s19, 0
      %p34 = por %p32, %p33
      %p35 = scmp.ne.s32.totalorder %s27, %s29
      %p36 = scmp.eq.s32.totalorder %s24, 2
      %p37 = por %p35, %p36
      %p38 = scmp.ne.s32.totalorder %s29, %s30
      %p39 = scmp.eq.s32.totalorder %s24, 0
      %p40 = por %p38, %p39
      %p41 = scmp.ne.s32.totalorder %s29, %s30
      %p42 = scmp.eq.s32.totalorder %s25, 2
      %p43 = por %p41, %p42
      %p45 = scmp.ne.s32.totalorder %s30, %s44
      %p46 = scmp.eq.s32.totalorder %s25, 0
      %p47 = por %p45, %p46
      %s49 = sadd.s32 %s48, 1
      %p52 = scmp.eq.s32.totalorder %s19, 2
      %p53 = scmp.ne.s32.totalorder %s48, %s50
      %p54 = scmp.eq.s32.totalorder %s19, 0
      %p55 = por %p53, %p54
      %p56 = scmp.ne.s32.totalorder %s48, %s50
      %p57 = scmp.eq.s32.totalorder %s24, 2
      %p58 = por %p56, %p57
      %p59 = scmp.ne.s32.totalorder %s50, %s51
      %p60 = scmp.eq.s32.totalorder %s24, 0
      %p61 = por %p59, %p60
      %p62 = scmp.ne.s32.totalorder %s50, %s51
      %p63 = scmp.eq.s32.totalorder %s25, 2
      %p64 = por %p62, %p63
      %p66 = scmp.ne.s32.totalorder %s51, %s65
      %p67 = scmp.eq.s32.totalorder %s25, 0
      %p68 = por %p66, %p67
      %s70 = sadd.s32 %s69, 1
      %p73 = scmp.eq.s32.totalorder %s19, 2
      %p74 = scmp.ne.s32.totalorder %s69, %s71
      %p75 = scmp.eq.s32.totalorder %s19, 0
      %p76 = por %p74, %p75
      %p77 = scmp.ne.s32.totalorder %s69, %s71
      %p78 = scmp.eq.s32.totalorder %s24, 2
      %p79 = por %p77, %p78
      %p80 = scmp.ne.s32.totalorder %s71, %s72
      %p81 = scmp.eq.s32.totalorder %s24, 0
      %p82 = por %p80, %p81
      %p83 = scmp.ne.s32.totalorder %s71, %s72
      %p84 = scmp.eq.s32.totalorder %s25, 2
      %p85 = por %p83, %p84
      %p87 = scmp.ne.s32.totalorder %s72, %s86
      %p88 = scmp.eq.s32.totalorder %s25, 0
      %p89 = por %p87, %p88
      %s91 = sadd.s32 %s90, 1
      %p94 = scmp.eq.s32.totalorder %s19, 2
      %p95 = scmp.ne.s32.totalorder %s90, %s92
      %p96 = scmp.eq.s32.totalorder %s19, 0
      %p97 = por %p95, %p96
      %p98 = scmp.ne.s32.totalorder %s90, %s92
      %p99 = scmp.eq.s32.totalorder %s24, 2
      %p100 = por %p98, %p99
      %p101 = scmp.ne.s32.totalorder %s92, %s93
      %p102 = scmp.eq.s32.totalorder %s24, 0
      %p103 = por %p101, %p102
      %p104 = scmp.ne.s32.totalorder %s92, %s93
      %p105 = scmp.eq.s32.totalorder %s25, 2
      %p106 = por %p104, %p105
      %p108 = scmp.ne.s32.totalorder %s93, %s107
      %p109 = scmp.eq.s32.totalorder %s25, 0
      %p110 = por %p108, %p109
      %s112 = sadd.s32 %s111, 1
      %p115 = scmp.eq.s32.totalorder %s19, 2
      %p116 = scmp.ne.s32.totalorder %s111, %s113
      %p117 = scmp.eq.s32.totalorder %s19, 0
      %p118 = por %p116, %p117
      %p119 = scmp.ne.s32.totalorder %s111, %s113
      %p120 = scmp.eq.s32.totalorder %s24, 2
      %p121 = por %p119, %p120
      %p122 = scmp.ne.s32.totalorder %s113, %s114
      %p123 = scmp.eq.s32.totalorder %s24, 0
      %p124 = por %p122, %p123
      %p125 = scmp.ne.s32.totalorder %s113, %s114
      %p126 = scmp.eq.s32.totalorder %s25, 2
      %p127 = por %p125, %p126
      %p129 = scmp.ne.s32.totalorder %s114, %s128
      %p130 = scmp.eq.s32.totalorder %s25, 0
      %p131 = por %p129, %p130
      %s133 = sadd.s32 %s132, 1
      %p136 = scmp.eq.s32.totalorder %s19, 2
      %p137 = scmp.ne.s32.totalorder %s132, %s134
      %p138 = scmp.eq.s32.totalorder %s19, 0
      %p139 = por %p137, %p138
      %p140 = scmp.ne.s32.totalorder %s132, %s134
      %p141 = scmp.eq.s32.totalorder %s24, 2
      %p142 = por %p140, %p141
      %p143 = scmp.ne.s32.totalorder %s134, %s135
      %p144 = scmp.eq.s32.totalorder %s24, 0
      %p145 = por %p143, %p144
      %p146 = scmp.ne.s32.totalorder %s134, %s135
      %p147 = scmp.eq.s32.totalorder %s25, 2
      %p148 = por %p146, %p147
      %p150 = scmp.ne.s32.totalorder %s135, %s149
      %p151 = scmp.eq.s32.totalorder %s25, 0
      %p152 = por %p150, %p151
      %s154 = sadd.s32 %s153, 1
      %p157 = scmp.eq.s32.totalorder %s19, 2
      %p158 = scmp.ne.s32.totalorder %s153, %s155
      %p159 = scmp.eq.s32.totalorder %s19, 0
      %p160 = por %p158, %p159
      %p161 = scmp.ne.s32.totalorder %s153, %s155
      %p162 = scmp.eq.s32.totalorder %s24, 2
      %p163 = por %p161, %p162
      %p164 = scmp.ne.s32.totalorder %s155, %s156
      %p165 = scmp.eq.s32.totalorder %s24, 0
      %p166 = por %p164, %p165
      %p167 = scmp.ne.s32.totalorder %s155, %s156
      %p168 = scmp.eq.s32.totalorder %s25, 2
      %p169 = por %p167, %p168
      %p171 = scmp.ne.s32.totalorder %s156, %s170
      %p172 = scmp.eq.s32.totalorder %s25, 0
      %p173 = por %p171, %p172
      %s174 = ssub.s32 %s19, %s26
      %p175 = scmp.eq.s32.totalorder %s174, 0
      %s177 = sadd.s32 %s176, 1
      %s178 = scalar_select %p175, %s176, %s177
      %p181 = pneg %p175
      %p182 = scmp.eq.s32.totalorder %s19, 2
      %p183 = por %p181, %p182
      %p184 = scmp.ne.s32.totalorder %s176, %s179
      %p185 = scmp.eq.s32.totalorder %s19, 0
      %p186 = por %p184, %p185
      %p187 = scmp.ne.s32.totalorder %s176, %s179
      %p188 = scmp.eq.s32.totalorder %s24, 2
      %p189 = por %p187, %p188
      %p190 = scmp.ne.s32.totalorder %s179, %s180
      %p191 = scmp.eq.s32.totalorder %s24, 0
      %p192 = por %p190, %p191
      %p193 = scmp.ne.s32.totalorder %s179, %s180
      %p194 = scmp.eq.s32.totalorder %s25, 2
      %p195 = por %p193, %p194
      %p197 = scmp.ne.s32.totalorder %s180, %s196
      %p198 = scmp.eq.s32.totalorder %s25, 0
      %p199 = por %p197, %p198
      %s200 = ssub.s32 %s19, %s26
      %p201 = scmp.eq.s32.totalorder %s200, 0
      %s203 = sadd.s32 %s202, 1
      %s204 = scalar_select %p201, %s202, %s203
      %p207 = pneg %p201
      %p208 = scmp.eq.s32.totalorder %s19, 2
      %p209 = por %p207, %p208
      %p210 = scmp.ne.s32.totalorder %s202, %s205
      %p211 = scmp.eq.s32.totalorder %s19, 0
      %p212 = por %p210, %p211
      %p213 = scmp.ne.s32.totalorder %s202, %s205
      %p214 = scmp.eq.s32.totalorder %s24, 2
      %p215 = por %p213, %p214
      %p216 = scmp.ne.s32.totalorder %s205, %s206
      %p217 = scmp.eq.s32.totalorder %s24, 0
      %p218 = por %p216, %p217
      %p219 = scmp.ne.s32.totalorder %s205, %s206
      %p220 = scmp.eq.s32.totalorder %s25, 2
      %p221 = por %p219, %p220
      %p223 = scmp.ne.s32.totalorder %s206, %s222
      %p224 = scmp.eq.s32.totalorder %s25, 0
      %p225 = por %p223, %p224
      %s226 = ssub.s32 %s19, %s26
      %p227 = scmp.eq.s32.totalorder %s226, 0
      %s229 = sadd.s32 %s228, 1
      %s230 = scalar_select %p227, %s228, %s229
      %p233 = pneg %p227
      %p234 = scmp.eq.s32.totalorder %s19, 2
      %p235 = por %p233, %p234
      %p236 = scmp.ne.s32.totalorder %s228, %s231
      %p237 = scmp.eq.s32.totalorder %s19, 0
      %p238 = por %p236, %p237
      %p239 = scmp.ne.s32.totalorder %s228, %s231
      %p240 = scmp.eq.s32.totalorder %s24, 2
      %p241 = por %p239, %p240
      %p242 = scmp.ne.s32.totalorder %s231, %s232
      %p243 = scmp.eq.s32.totalorder %s24, 0
      %p244 = por %p242, %p243
      %p245 = scmp.ne.s32.totalorder %s231, %s232
      %p246 = scmp.eq.s32.totalorder %s25, 2
      %p247 = por %p245, %p246
      %p249 = scmp.ne.s32.totalorder %s232, %s248
      %p250 = scmp.eq.s32.totalorder %s25, 0
      %p251 = por %p249, %p250
      %s252 = ssub.s32 %s19, %s26
      %p253 = scmp.eq.s32.totalorder %s252, 0
      %s255 = sadd.s32 %s254, 1
      %s256 = scalar_select %p253, %s254, %s255
      %p259 = pneg %p253
      %p260 = scmp.eq.s32.totalorder %s19, 2
      %p261 = por %p259, %p260
      %p262 = scmp.ne.s32.totalorder %s254, %s257
      %p263 = scmp.eq.s32.totalorder %s19, 0
      %p264 = por %p262, %p263
      %p265 = scmp.ne.s32.totalorder %s254, %s257
      %p266 = scmp.eq.s32.totalorder %s24, 2
      %p267 = por %p265, %p266
      %p268 = scmp.ne.s32.totalorder %s257, %s258
      %p269 = scmp.eq.s32.totalorder %s24, 0
      %p270 = por %p268, %p269
      %p271 = scmp.ne.s32.totalorder %s257, %s258
      %p272 = scmp.eq.s32.totalorder %s25, 2
      %p273 = por %p271, %p272
      %p275 = scmp.ne.s32.totalorder %s258, %s274
      %p276 = scmp.eq.s32.totalorder %s25, 0
      %p277 = por %p275, %p276
      %s278 = ssub.s32 %s19, %s26
      %p279 = scmp.eq.s32.totalorder %s278, 0
      %s281 = sadd.s32 %s280, 1
      %s282 = scalar_select %p279, %s280, %s281
      %p285 = pneg %p279
      %p286 = scmp.eq.s32.totalorder %s19, 2
      %p287 = por %p285, %p286
      %p288 = scmp.ne.s32.totalorder %s280, %s283
      %p289 = scmp.eq.s32.totalorder %s19, 0
      %p290 = por %p288, %p289
      %p291 = scmp.ne.s32.totalorder %s280, %s283
      %p292 = scmp.eq.s32.totalorder %s24, 2
      %p293 = por %p291, %p292
      %p294 = scmp.ne.s32.totalorder %s283, %s284
      %p295 = scmp.eq.s32.totalorder %s24, 0
      %p296 = por %p294, %p295
      %p297 = scmp.ne.s32.totalorder %s283, %s284
      %p298 = scmp.eq.s32.totalorder %s25, 2
      %p299 = por %p297, %p298
      %p301 = scmp.ne.s32.totalorder %s284, %s300
      %p302 = scmp.eq.s32.totalorder %s25, 0
      %p303 = por %p301, %p302
      %s305 = sadd.s32 %s304, 1
      %p308 = scmp.eq.s32.totalorder %s19, 2
      %p309 = scmp.ne.s32.totalorder %s304, %s306
      %p310 = scmp.eq.s32.totalorder %s19, 0
      %p311 = por %p309, %p310
      %p312 = scmp.ne.s32.totalorder %s304, %s306
      %p313 = scmp.eq.s32.totalorder %s24, 2
      %p314 = por %p312, %p313
      %p315 = scmp.ne.s32.totalorder %s306, %s307
      %p316 = scmp.eq.s32.totalorder %s24, 0
      %p317 = por %p315, %p316
      %p318 = scmp.ne.s32.totalorder %s306, %s307
      %p319 = scmp.eq.s32.totalorder %s25, 2
      %p320 = por %p318, %p319
      %p322 = scmp.ne.s32.totalorder %s307, %s321
      %p323 = scmp.eq.s32.totalorder %s25, 0
      %p324 = por %p322, %p323
      %p325 = scmp.le.s32.totalorder 1, %s19
      %p326 = scmp.lt.s32.totalorder %s19, 4
      %p327 = pnand %p325, %p326
      %p328 = pneg %p327
      // Predicated region
      $region9: #{gnn_graph_forward.1} parent=5 // pred_check
        _
      $region10: #{gnn_graph_forward.1} parent=5 // pred_check_branch
        %330 = sbr.rel (%p327) target = $region12
      $region11: #{gnn_graph_forward.1} parent=5 // pred_region
        %s331 = ssub.s32 %s19, 1
        // Predicated region
        $region13: #{gnn_graph_forward.1} parent=11 // pred_check
          %p332 = pneg %p40
        $region14: #{gnn_graph_forward.1} parent=11 // pred_check_branch
          %334 = sbr.rel (%p332) target = $region16
        $region15: #{gnn_graph_forward.1} parent=11 // pred_region
          _
        $region16: #{gnn_graph_forward.1} parent=11 // pred_fallthru
          _
        // Predicated region
        $region17: #{gnn_graph_forward.1} parent=11 // pred_check
          %p335 = pneg %p61
        $region18: #{gnn_graph_forward.1} parent=11 // pred_check_branch
          %337 = sbr.rel (%p335) target = $region20
        $region19: #{gnn_graph_forward.1} parent=11 // pred_region
          _
        $region20: #{gnn_graph_forward.1} parent=11 // pred_fallthru
          _
        // Predicated region
        $region21: #{gnn_graph_forward.1} parent=11 // pred_check
          %p338 = pneg %p82
        $region22: #{gnn_graph_forward.1} parent=11 // pred_check_branch
          %340 = sbr.rel (%p338) target = $region24
        $region23: #{gnn_graph_forward.1} parent=11 // pred_region
          _
        $region24: #{gnn_graph_forward.1} parent=11 // pred_fallthru
          _
        // Predicated region
        $region25: #{gnn_graph_forward.1} parent=11 // pred_check
          %p341 = pneg %p103
        $region26: #{gnn_graph_forward.1} parent=11 // pred_check_branch
          %343 = sbr.rel (%p341) target = $region28
        $region27: #{gnn_graph_forward.1} parent=11 // pred_region
          _
        $region28: #{gnn_graph_forward.1} parent=11 // pred_fallthru
          _
        // Predicated region
        $region29: #{gnn_graph_forward.1} parent=11 // pred_check
          %p344 = pneg %p124
        $region30: #{gnn_graph_forward.1} parent=11 // pred_check_branch
          %346 = sbr.rel (%p344) target = $region32
        $region31: #{gnn_graph_forward.1} parent=11 // pred_region
          _
        $region32: #{gnn_graph_forward.1} parent=11 // pred_fallthru
          _
        // Predicated region
        $region33: #{gnn_graph_forward.1} parent=11 // pred_check
          %p347 = pneg %p145
        $region34: #{gnn_graph_forward.1} parent=11 // pred_check_branch
          %349 = sbr.rel (%p347) target = $region36
        $region35: #{gnn_graph_forward.1} parent=11 // pred_region
          _
        $region36: #{gnn_graph_forward.1} parent=11 // pred_fallthru
          _
        // Predicated region
        $region37: #{gnn_graph_forward.1} parent=11 // pred_check
          %p350 = pneg %p166
        $region38: #{gnn_graph_forward.1} parent=11 // pred_check_branch
          %352 = sbr.rel (%p350) target = $region40
        $region39: #{gnn_graph_forward.1} parent=11 // pred_region
          %354 = vsyncadd [#allocation5], 0
          %s356 = sshll.u32 %s6, 4
          %s357 = int_to_ptr.vmem [resolvable:$true] %s356
          %359 = dma.vmem_to_smem %s357, 16, [#allocation4], [#allocation5]
        $region40: #{gnn_graph_forward.1} parent=11 // pred_fallthru
          _
      $region12: #{gnn_graph_forward.1} parent=5 // pred_fallthru
        _
      %p360 = scmp.lt.s32.totalorder %s19, 3
      // Predicated region
      $region41: #{gnn_graph_forward.1} parent=5 // pred_check
        %p361 = pneg %p360
      $region42: #{gnn_graph_forward.1} parent=5 // pred_check_branch
        %363 = sbr.rel (%p361) target = $region44
      $region43: #{gnn_graph_forward.1} parent=5 // pred_region
        // Predicated region
        $region45: #{gnn_graph_forward.1} parent=43 // pred_check
          %p364 = pneg %p186
        $region46: #{gnn_graph_forward.1} parent=43 // pred_check_branch
          %366 = sbr.rel (%p364) target = $region48
        $region47: #{gnn_graph_forward.1} parent=43 // pred_region
          %p367 = scmp.lt.s32.totalorder %s19, 2
          %s368 = scalar_select %p367, %s19, 2
          %s369 = smul.addr %s368, 16
          %s370 = smul.addr %s369, 4
          %s371 = scalar_lea.vmem %s7, %s370
        $region48: #{gnn_graph_forward.1} parent=43 // pred_fallthru
          _
        // Predicated region
        $region49: #{gnn_graph_forward.1} parent=43 // pred_check
          %p372 = pneg %p212
        $region50: #{gnn_graph_forward.1} parent=43 // pred_check_branch
          %374 = sbr.rel (%p372) target = $region52
        $region51: #{gnn_graph_forward.1} parent=43 // pred_region
          %p375 = scmp.lt.s32.totalorder %s19, 2
          %s376 = scalar_select %p375, %s19, 2
          %s377 = smul.addr %s376, 64
          %s378 = smul.addr %s377, 4
          %s379 = scalar_lea.vmem %s8, %s378
        $region52: #{gnn_graph_forward.1} parent=43 // pred_fallthru
          _
        // Predicated region
        $region53: #{gnn_graph_forward.1} parent=43 // pred_check
          %p380 = pneg %p238
        $region54: #{gnn_graph_forward.1} parent=43 // pred_check_branch
          %382 = sbr.rel (%p380) target = $region56
        $region55: #{gnn_graph_forward.1} parent=43 // pred_region
          %p383 = scmp.lt.s32.totalorder %s19, 2
          %s384 = scalar_select %p383, %s19, 2
          %s385 = smul.addr %s384, 64
          %s386 = smul.addr %s385, 4
          %s387 = scalar_lea.vmem %s9, %s386
        $region56: #{gnn_graph_forward.1} parent=43 // pred_fallthru
          _
        // Predicated region
        $region57: #{gnn_graph_forward.1} parent=43 // pred_check
          %p388 = pneg %p264
        $region58: #{gnn_graph_forward.1} parent=43 // pred_check_branch
          %390 = sbr.rel (%p388) target = $region60
        $region59: #{gnn_graph_forward.1} parent=43 // pred_region
          %p391 = scmp.lt.s32.totalorder %s19, 2
          %s392 = scalar_select %p391, %s19, 2
          %s393 = smul.addr %s392, 2
          %s394 = smul.addr %s393, 8
          %s395 = scalar_lea.vmem %s10, %s394
        $region60: #{gnn_graph_forward.1} parent=43 // pred_fallthru
          _
        // Predicated region
        $region61: #{gnn_graph_forward.1} parent=43 // pred_check
          %p396 = pneg %p290
        $region62: #{gnn_graph_forward.1} parent=43 // pred_check_branch
          %398 = sbr.rel (%p396) target = $region64
        $region63: #{gnn_graph_forward.1} parent=43 // pred_region
          %p399 = scmp.lt.s32.totalorder %s19, 2
          %s400 = scalar_select %p399, %s19, 2
          %s401 = smul.addr %s400, 8
          %s402 = scalar_lea.vmem %s11, %s401
        $region64: #{gnn_graph_forward.1} parent=43 // pred_fallthru
          _
      $region44: #{gnn_graph_forward.1} parent=5 // pred_fallthru
        _
      %p403 = scmp.le.s32.totalorder 1, %s19
      %p404 = scmp.lt.s32.totalorder %s19, 4
      %p405 = pnand %p403, %p404
      %p406 = pneg %p405
      // Predicated region
      $region65: #{gnn_graph_forward.1} parent=5 // pred_check
        _
      $region66: #{gnn_graph_forward.1} parent=5 // pred_check_branch
        %408 = sbr.rel (%p405) target = $region68
      $region67: #{gnn_graph_forward.1} parent=5 // pred_region
        %s409 = ssub.s32 %s19, 1
        // Predicated region
        $region69: #{gnn_graph_forward.1} parent=67 // pred_check
          %p410 = pneg %p166
        $region70: #{gnn_graph_forward.1} parent=67 // pred_check_branch
          %412 = sbr.rel (%p410) target = $region72
        $region71: #{gnn_graph_forward.1} parent=67 // pred_region
          %414 = dma.done [#allocation5], 16
        $region72: #{gnn_graph_forward.1} parent=67 // pred_fallthru
          _
        %415 = sfence
        %p416 = pneg %p40
        %p417 = pneg %p37
        %p418 = pneg %p61
        %p419 = pneg %p58
        %p420 = pneg %p82
        %p421 = pneg %p79
        %p422 = pneg %p103
        %p423 = pneg %p100
        %p424 = pneg %p124
        %p425 = pneg %p121
        %p426 = pneg %p145
        %p427 = pneg %p142
        %p428 = pneg %p166
        %p429 = pneg %p163
        %p430 = scmp.lt.s32.totalorder %s24, 2
        %s431 = scalar_select %p430, %s24, 2
        %s432 = smul.addr %s431, 16
        %s433 = smul.addr %s432, 4
        %s434 = scalar_lea.vmem %s7, %s433
        %p435 = pneg %p192
        %p436 = pneg %p189
        %p437 = scmp.lt.s32.totalorder %s24, 2
        %s438 = scalar_select %p437, %s24, 2
        %s439 = smul.addr %s438, 64
        %s440 = smul.addr %s439, 4
        %s441 = scalar_lea.vmem %s8, %s440
        %p442 = pneg %p218
        %p443 = pneg %p215
        %p444 = scmp.lt.s32.totalorder %s24, 2
        %s445 = scalar_select %p444, %s24, 2
        %s446 = smul.addr %s445, 64
        %s447 = smul.addr %s446, 4
        %s448 = scalar_lea.vmem %s9, %s447
        %p449 = pneg %p244
        %p450 = pneg %p241
        %p451 = scmp.lt.s32.totalorder %s24, 2
        %s452 = scalar_select %p451, %s24, 2
        %s453 = smul.addr %s452, 2
        %s454 = smul.addr %s453, 8
        %s455 = scalar_lea.vmem %s10, %s454
        %p456 = pneg %p270
        %p457 = pneg %p267
        %p458 = scmp.lt.s32.totalorder %s24, 2
        %s459 = scalar_select %p458, %s24, 2
        %s460 = smul.addr %s459, 8
        %s461 = scalar_lea.vmem %s11, %s460
        %p462 = pneg %p296
        %p463 = pneg %p293
        %p464 = pneg %p317
        %p465 = pneg %p314
        %p466 = scmp.lt.s32.totalorder %s24, 2
        %s467 = scalar_select %p466, %s24, 2
        %s468 = smul.addr %s467, 16
        %s469 = smul.addr %s468, 4
        %s470 = scalar_lea.vmem %s7, %s469
        %p471 = scmp.lt.s32.totalorder %s24, 2
        %s472 = scalar_select %p471, %s24, 2
        %s473 = smul.addr %s472, 64
        %s474 = smul.addr %s473, 4
        %s475 = scalar_lea.vmem %s8, %s474
        %p476 = scmp.lt.s32.totalorder %s24, 2
        %s477 = scalar_select %p476, %s24, 2
        %s478 = smul.addr %s477, 64
        %s479 = smul.addr %s478, 4
        %s480 = scalar_lea.vmem %s9, %s479
        %p481 = scmp.lt.s32.totalorder %s24, 2
        %s482 = scalar_select %p481, %s24, 2
        %s483 = smul.addr %s482, 2
        %s484 = smul.addr %s483, 8
        %s485 = scalar_lea.vmem %s10, %s484
        %p486 = scmp.lt.s32.totalorder %s24, 2
        %s487 = scalar_select %p486, %s24, 2
        %s488 = smul.addr %s487, 8
        %s489 = scalar_lea.vmem %s11, %s488
        %p490 = scmp.eq.s32.totalorder %s24, 0
        // Predicated region
        $region73: #{gnn_graph_forward.1} parent=67 // pred_check
          %p491 = pneg %p490
        $region74: #{gnn_graph_forward.1} parent=67 // pred_check_branch
          %493 = sbr.rel (%p491) target = $region76
        $region75: #{gnn_graph_forward.1} parent=67 // pred_region
          %v494 = vld [vmem:[%s0] sm:$0xff]
          %v495 = vld [vmem:[%s0 + $0x8] sm:$0xff]
          %v496 = vld [vmem:[%s0 + $0x10] sm:$0xff]
          %v497 = vld [vmem:[%s0 + $0x18] sm:$0xff]
          %v498 = vld [vmem:[%s0 + $0x20] sm:$0xff]
          %v499 = vld [vmem:[%s0 + $0x28] sm:$0xff]
          %v500 = vld [vmem:[%s0 + $0x30] sm:$0xff]
          %v501 = vld [vmem:[%s0 + $0x38] sm:$0xff]
          %v502 = vld [vmem:[%s0 + $0x40] sm:$0xff]
          %v503 = vld [vmem:[%s0 + $0x48] sm:$0xff]
          %v504 = vld [vmem:[%s0 + $0x50] sm:$0xff]
          %v505 = vld [vmem:[%s0 + $0x58] sm:$0xff]
          %v506 = vld [vmem:[%s0 + $0x60] sm:$0xff]
          %v507 = vld [vmem:[%s0 + $0x68] sm:$0xff]
          %v508 = vld [vmem:[%s0 + $0x70] sm:$0xff]
          %v509 = vld [vmem:[%s0 + $0x78] sm:$0xff]
          %510 = vst [vmem:[#allocation2] sm:$0xff] %v494
          %511 = vst [vmem:[#allocation2 + $0x8] sm:$0xff] %v495
          %512 = vst [vmem:[#allocation2 + $0x10] sm:$0xff] %v496
          %513 = vst [vmem:[#allocation2 + $0x18] sm:$0xff] %v497
          %514 = vst [vmem:[#allocation2 + $0x20] sm:$0xff] %v498
          %515 = vst [vmem:[#allocation2 + $0x28] sm:$0xff] %v499
          %516 = vst [vmem:[#allocation2 + $0x30] sm:$0xff] %v500
          %517 = vst [vmem:[#allocation2 + $0x38] sm:$0xff] %v501
          %518 = vst [vmem:[#allocation2 + $0x40] sm:$0xff] %v502
          %519 = vst [vmem:[#allocation2 + $0x48] sm:$0xff] %v503
          %520 = vst [vmem:[#allocation2 + $0x50] sm:$0xff] %v504
          %521 = vst [vmem:[#allocation2 + $0x58] sm:$0xff] %v505
          %522 = vst [vmem:[#allocation2 + $0x60] sm:$0xff] %v506
          %523 = vst [vmem:[#allocation2 + $0x68] sm:$0xff] %v507
          %524 = vst [vmem:[#allocation2 + $0x70] sm:$0xff] %v508
          %525 = vst [vmem:[#allocation2 + $0x78] sm:$0xff] %v509
          %v526 = vld [vmem:[%s1] sm:$0xff]
          %v527 = vld [vmem:[%s1 + $0x8] sm:$0xff]
          %v528 = vld [vmem:[%s1 + $0x10] sm:$0xff]
          %v529 = vld [vmem:[%s1 + $0x18] sm:$0xff]
          %v530 = vld [vmem:[%s1 + $0x20] sm:$0xff]
          %v531 = vld [vmem:[%s1 + $0x28] sm:$0xff]
          %v532 = vld [vmem:[%s1 + $0x30] sm:$0xff]
          %v533 = vld [vmem:[%s1 + $0x38] sm:$0xff]
          %v534 = vld [vmem:[%s1 + $0x40] sm:$0xff]
          %v535 = vld [vmem:[%s1 + $0x48] sm:$0xff]
          %v536 = vld [vmem:[%s1 + $0x50] sm:$0xff]
          %v537 = vld [vmem:[%s1 + $0x58] sm:$0xff]
          %v538 = vld [vmem:[%s1 + $0x60] sm:$0xff]
          %v539 = vld [vmem:[%s1 + $0x68] sm:$0xff]
          %v540 = vld [vmem:[%s1 + $0x70] sm:$0xff]
          %v541 = vld [vmem:[%s1 + $0x78] sm:$0xff]
          %542 = vst [vmem:[#allocation3] sm:$0xff] %v526
          %543 = vst [vmem:[#allocation3 + $0x8] sm:$0xff] %v527
          %544 = vst [vmem:[#allocation3 + $0x10] sm:$0xff] %v528
          %545 = vst [vmem:[#allocation3 + $0x18] sm:$0xff] %v529
          %546 = vst [vmem:[#allocation3 + $0x20] sm:$0xff] %v530
          %547 = vst [vmem:[#allocation3 + $0x28] sm:$0xff] %v531
          %548 = vst [vmem:[#allocation3 + $0x30] sm:$0xff] %v532
          %549 = vst [vmem:[#allocation3 + $0x38] sm:$0xff] %v533
          %550 = vst [vmem:[#allocation3 + $0x40] sm:$0xff] %v534
          %551 = vst [vmem:[#allocation3 + $0x48] sm:$0xff] %v535
          %552 = vst [vmem:[#allocation3 + $0x50] sm:$0xff] %v536
          %553 = vst [vmem:[#allocation3 + $0x58] sm:$0xff] %v537
          %554 = vst [vmem:[#allocation3 + $0x60] sm:$0xff] %v538
          %555 = vst [vmem:[#allocation3 + $0x68] sm:$0xff] %v539
          %556 = vst [vmem:[#allocation3 + $0x70] sm:$0xff] %v540
          %557 = vst [vmem:[#allocation3 + $0x78] sm:$0xff] %v541
        $region76: #{gnn_graph_forward.1} parent=67 // pred_fallthru
          _
        %v558 = vld [vmem:[#allocation2] sm:$0xff]
        %v559 = vld [vmem:[#allocation2 + $0x8] sm:$0xff]
        %v560 = vld [vmem:[#allocation2 + $0x10] sm:$0xff]
        %v561 = vld [vmem:[#allocation2 + $0x18] sm:$0xff]
        %v562 = vld [vmem:[#allocation2 + $0x20] sm:$0xff]
        %v563 = vld [vmem:[#allocation2 + $0x28] sm:$0xff]
        %v564 = vld [vmem:[#allocation2 + $0x30] sm:$0xff]
        %v565 = vld [vmem:[#allocation2 + $0x38] sm:$0xff]
        %v566 = vld [vmem:[#allocation2 + $0x40] sm:$0xff]
        %v567 = vld [vmem:[#allocation2 + $0x48] sm:$0xff]
        %v568 = vld [vmem:[#allocation2 + $0x50] sm:$0xff]
        %v569 = vld [vmem:[#allocation2 + $0x58] sm:$0xff]
        %v570 = vld [vmem:[#allocation2 + $0x60] sm:$0xff]
        %v571 = vld [vmem:[#allocation2 + $0x68] sm:$0xff]
        %v572 = vld [vmem:[#allocation2 + $0x70] sm:$0xff]
        %v573 = vld [vmem:[#allocation2 + $0x78] sm:$0xff]
        %v574 = vld [vmem:[%s4] sm:$0xf]
        %v575 = vld [vmem:[%s4 + $0x4] sm:$0xf]
        %v576 = vld [vmem:[%s4 + $0x8] sm:$0xf]
        %v577 = vld [vmem:[%s4 + $0xc] sm:$0xf]
        %v578 = vld [vmem:[%s4 + $0x10] sm:$0xf]
        %v579 = vld [vmem:[%s4 + $0x14] sm:$0xf]
        %v580 = vld [vmem:[%s4 + $0x18] sm:$0xf]
        %v581 = vld [vmem:[%s4 + $0x1c] sm:$0xf]
        %v582 = vld [vmem:[%s4 + $0x20] sm:$0xf]
        %v583 = vld [vmem:[%s4 + $0x24] sm:$0xf]
        %v584 = vld [vmem:[%s4 + $0x28] sm:$0xf]
        %v585 = vld [vmem:[%s4 + $0x2c] sm:$0xf]
        %v586 = vld [vmem:[%s4 + $0x30] sm:$0xf]
        %v587 = vld [vmem:[%s4 + $0x34] sm:$0xf]
        %v588 = vld [vmem:[%s4 + $0x38] sm:$0xf]
        %v589 = vld [vmem:[%s4 + $0x3c] sm:$0xf]
        %v590 = vld [vmem:[#allocation3] sm:$0xff]
        %v591 = vld [vmem:[#allocation3 + $0x8] sm:$0xff]
        %v592 = vld [vmem:[#allocation3 + $0x10] sm:$0xff]
        %v593 = vld [vmem:[#allocation3 + $0x18] sm:$0xff]
        %v594 = vld [vmem:[#allocation3 + $0x20] sm:$0xff]
        %v595 = vld [vmem:[#allocation3 + $0x28] sm:$0xff]
        %v596 = vld [vmem:[#allocation3 + $0x30] sm:$0xff]
        %v597 = vld [vmem:[#allocation3 + $0x38] sm:$0xff]
        %v598 = vld [vmem:[#allocation3 + $0x40] sm:$0xff]
        %v599 = vld [vmem:[#allocation3 + $0x48] sm:$0xff]
        %v600 = vld [vmem:[#allocation3 + $0x50] sm:$0xff]
        %v601 = vld [vmem:[#allocation3 + $0x58] sm:$0xff]
        %v602 = vld [vmem:[#allocation3 + $0x60] sm:$0xff]
        %v603 = vld [vmem:[#allocation3 + $0x68] sm:$0xff]
        %v604 = vld [vmem:[#allocation3 + $0x70] sm:$0xff]
        %v605 = vld [vmem:[#allocation3 + $0x78] sm:$0xff]
        %v606 = vpack.c.bf16 %v591, %v590
        %v607 = vpack.c.bf16 %v593, %v592
        %v608 = vpack.c.bf16 %v595, %v594
        %v609 = vpack.c.bf16 %v597, %v596
        %v610 = vpack.c.bf16 %v599, %v598
        %v611 = vpack.c.bf16 %v601, %v600
        %v612 = vpack.c.bf16 %v603, %v602
        %v613 = vpack.c.bf16 %v605, %v604
        %v630 = vunpack.c.l.b16 %v574
        %v631 = vunpack.c.l.b16 %v575
        %v632 = vunpack.c.l.b16 %v576
        %v633 = vunpack.c.l.b16 %v577
        %v634 = vunpack.c.l.b16 %v578
        %v635 = vunpack.c.l.b16 %v579
        %v636 = vunpack.c.l.b16 %v580
        %v637 = vunpack.c.l.b16 %v581
        %v638 = vunpack.c.l.b16 %v582
        %v639 = vunpack.c.l.b16 %v583
        %v640 = vunpack.c.l.b16 %v584
        %v641 = vunpack.c.l.b16 %v585
        %v642 = vunpack.c.l.b16 %v586
        %v643 = vunpack.c.l.b16 %v587
        %v644 = vunpack.c.l.b16 %v588
        %v645 = vunpack.c.l.b16 %v589
        %v646 = vpack.c.b16 %v631, %v630
        %v647 = vpack.c.b16 %v633, %v632
        %v648 = vpack.c.b16 %v635, %v634
        %v649 = vpack.c.b16 %v637, %v636
        %v650 = vpack.c.b16 %v639, %v638
        %v651 = vpack.c.b16 %v641, %v640
        %v652 = vpack.c.b16 %v643, %v642
        %v653 = vpack.c.b16 %v645, %v644
        %662 = vmatpush.bf16.msra.mxu0 %v613
        %663 = vmatpush.bf16.msra.mxu0 %v612
        %664 = vmatpush.bf16.msra.mxu0 %v611
        %665 = vmatpush.bf16.msra.mxu0 %v610
        %666 = vmatpush.bf16.msra.mxu0 %v609
        %667 = vmatpush.bf16.msra.mxu0 %v608
        %668 = vmatpush.bf16.msra.mxu0 %v607
        %669 = vmatpush.bf16.msra.mxu0 %v606
        %670 = vmatmul.bf16.gmra.mxu0 %v646
        %v671 = vpop.f32.mrf.mxu0
        %v672 = vadd.f32 0.0, %v671
        %v673 = vpop.f32.mrf.mxu0
        %v674 = vadd.f32 0.0, %v673
        %675 = vmatmul.bf16.gmra.mxu0 %v647
        %v676 = vpop.f32.mrf.mxu0
        %v677 = vadd.f32 0.0, %v676
        %v678 = vpop.f32.mrf.mxu0
        %v679 = vadd.f32 0.0, %v678
        %680 = vmatmul.bf16.gmra.mxu0 %v648
        %v681 = vpop.f32.mrf.mxu0
        %v682 = vadd.f32 0.0, %v681
        %v683 = vpop.f32.mrf.mxu0
        %v684 = vadd.f32 0.0, %v683
        %685 = vmatmul.bf16.gmra.mxu0 %v649
        %v686 = vpop.f32.mrf.mxu0
        %v687 = vadd.f32 0.0, %v686
        %v688 = vpop.f32.mrf.mxu0
        %v689 = vadd.f32 0.0, %v688
        %690 = vmatmul.bf16.gmra.mxu0 %v650
        %v691 = vpop.f32.mrf.mxu0
        %v692 = vadd.f32 0.0, %v691
        %v693 = vpop.f32.mrf.mxu0
        %v694 = vadd.f32 0.0, %v693
        %695 = vmatmul.bf16.gmra.mxu0 %v651
        %v696 = vpop.f32.mrf.mxu0
        %v697 = vadd.f32 0.0, %v696
        %v698 = vpop.f32.mrf.mxu0
        %v699 = vadd.f32 0.0, %v698
        %700 = vmatmul.bf16.gmra.mxu0 %v652
        %v701 = vpop.f32.mrf.mxu0
        %v702 = vadd.f32 0.0, %v701
        %v703 = vpop.f32.mrf.mxu0
        %v704 = vadd.f32 0.0, %v703
        %705 = vmatmul.bf16.gmra.mxu0 %v653
        %v706 = vpop.f32.mrf.mxu0
        %v707 = vadd.f32 0.0, %v706
        %v708 = vpop.f32.mrf.mxu0
        %v709 = vadd.f32 0.0, %v708
        %710 = vdwg.mxu0
        %v711 = vadd.f32 %v558, %v672
        %v712 = vadd.f32 %v559, %v674
        %v713 = vadd.f32 %v560, %v677
        %v714 = vadd.f32 %v561, %v679
        %v715 = vadd.f32 %v562, %v682
        %v716 = vadd.f32 %v563, %v684
        %v717 = vadd.f32 %v564, %v687
        %v718 = vadd.f32 %v565, %v689
        %v719 = vadd.f32 %v566, %v692
        %v720 = vadd.f32 %v567, %v694
        %v721 = vadd.f32 %v568, %v697
        %v722 = vadd.f32 %v569, %v699
        %v723 = vadd.f32 %v570, %v702
        %v724 = vadd.f32 %v571, %v704
        %v725 = vadd.f32 %v572, %v707
        %v726 = vadd.f32 %v573, %v709
        %v727 = vpack.c.bf16 %v712, %v711
        %v728 = vpack.c.bf16 %v714, %v713
        %v729 = vpack.c.bf16 %v716, %v715
        %v730 = vpack.c.bf16 %v718, %v717
        %v731 = vpack.c.bf16 %v720, %v719
        %v732 = vpack.c.bf16 %v722, %v721
        %v733 = vpack.c.bf16 %v724, %v723
        %v734 = vpack.c.bf16 %v726, %v725
        %v735 = vld [vmem:[%s2] sm:$0xf]
        %v736 = vld [vmem:[%s2 + $0x4] sm:$0xf]
        %v737 = vld [vmem:[%s2 + $0x8] sm:$0xf]
        %v738 = vld [vmem:[%s2 + $0xc] sm:$0xf]
        %v739 = vld [vmem:[%s2 + $0x10] sm:$0xf]
        %v740 = vld [vmem:[%s2 + $0x14] sm:$0xf]
        %v741 = vld [vmem:[%s2 + $0x18] sm:$0xf]
        %v742 = vld [vmem:[%s2 + $0x1c] sm:$0xf]
        %v743 = vld [vmem:[%s2 + $0x20] sm:$0xf]
        %v744 = vld [vmem:[%s2 + $0x24] sm:$0xf]
        %v745 = vld [vmem:[%s2 + $0x28] sm:$0xf]
        %v746 = vld [vmem:[%s2 + $0x2c] sm:$0xf]
        %v747 = vld [vmem:[%s2 + $0x30] sm:$0xf]
        %v748 = vld [vmem:[%s2 + $0x34] sm:$0xf]
        %v749 = vld [vmem:[%s2 + $0x38] sm:$0xf]
        %v750 = vld [vmem:[%s2 + $0x3c] sm:$0xf]
        %v767 = vunpack.c.l.b16 %v735
        %v768 = vunpack.c.l.b16 %v736
        %v769 = vunpack.c.l.b16 %v737
        %v770 = vunpack.c.l.b16 %v738
        %v771 = vunpack.c.l.b16 %v739
        %v772 = vunpack.c.l.b16 %v740
        %v773 = vunpack.c.l.b16 %v741
        %v774 = vunpack.c.l.b16 %v742
        %v775 = vunpack.c.l.b16 %v743
        %v776 = vunpack.c.l.b16 %v744
        %v777 = vunpack.c.l.b16 %v745
        %v778 = vunpack.c.l.b16 %v746
        %v779 = vunpack.c.l.b16 %v747
        %v780 = vunpack.c.l.b16 %v748
        %v781 = vunpack.c.l.b16 %v749
        %v782 = vunpack.c.l.b16 %v750
        %v783 = vpack.c.b16 %v768, %v767
        %v784 = vpack.c.b16 %v770, %v769
        %v785 = vpack.c.b16 %v772, %v771
        %v786 = vpack.c.b16 %v774, %v773
        %v787 = vpack.c.b16 %v776, %v775
        %v788 = vpack.c.b16 %v778, %v777
        %v789 = vpack.c.b16 %v780, %v779
        %v790 = vpack.c.b16 %v782, %v781
        %799 = vmatpush.bf16.msra.mxu0 %v734
        %800 = vmatpush.bf16.msra.mxu0 %v733
        %801 = vmatpush.bf16.msra.mxu0 %v732
        %802 = vmatpush.bf16.msra.mxu0 %v731
        %803 = vmatpush.bf16.msra.mxu0 %v730
        %804 = vmatpush.bf16.msra.mxu0 %v729
        %805 = vmatpush.bf16.msra.mxu0 %v728
        %806 = vmatpush.bf16.msra.mxu0 %v727
        %807 = vmatmul.bf16.gmra.mxu0 %v783
        %v808 = vpop.f32.mrf.mxu0
        %v809 = vadd.f32 0.0, %v808
        %v810 = vpop.f32.mrf.mxu0
        %v811 = vadd.f32 0.0, %v810
        %812 = vmatmul.bf16.gmra.mxu0 %v784
        %v813 = vpop.f32.mrf.mxu0
        %v814 = vadd.f32 0.0, %v813
        %v815 = vpop.f32.mrf.mxu0
        %v816 = vadd.f32 0.0, %v815
        %817 = vmatmul.bf16.gmra.mxu0 %v785
        %v818 = vpop.f32.mrf.mxu0
        %v819 = vadd.f32 0.0, %v818
        %v820 = vpop.f32.mrf.mxu0
        %v821 = vadd.f32 0.0, %v820
        %822 = vmatmul.bf16.gmra.mxu0 %v786
        %v823 = vpop.f32.mrf.mxu0
        %v824 = vadd.f32 0.0, %v823
        %v825 = vpop.f32.mrf.mxu0
        %v826 = vadd.f32 0.0, %v825
        %827 = vmatmul.bf16.gmra.mxu0 %v787
        %v828 = vpop.f32.mrf.mxu0
        %v829 = vadd.f32 0.0, %v828
        %v830 = vpop.f32.mrf.mxu0
        %v831 = vadd.f32 0.0, %v830
        %832 = vmatmul.bf16.gmra.mxu0 %v788
        %v833 = vpop.f32.mrf.mxu0
        %v834 = vadd.f32 0.0, %v833
        %v835 = vpop.f32.mrf.mxu0
        %v836 = vadd.f32 0.0, %v835
        %837 = vmatmul.bf16.gmra.mxu0 %v789
        %v838 = vpop.f32.mrf.mxu0
        %v839 = vadd.f32 0.0, %v838
        %v840 = vpop.f32.mrf.mxu0
        %v841 = vadd.f32 0.0, %v840
        %842 = vmatmul.bf16.gmra.mxu0 %v790
        %v843 = vpop.f32.mrf.mxu0
        %v844 = vadd.f32 0.0, %v843
        %v845 = vpop.f32.mrf.mxu0
        %v846 = vadd.f32 0.0, %v845
        %847 = vdwg.mxu0
        %v848 = vpack.c.bf16 %v809, %v809
        %v849 = vpack.c.bf16 %v811, %v811
        %v850 = vpack.c.bf16 %v814, %v814
        %v851 = vpack.c.bf16 %v816, %v816
        %v852 = vpack.c.bf16 %v819, %v819
        %v853 = vpack.c.bf16 %v821, %v821
        %v854 = vpack.c.bf16 %v824, %v824
        %v855 = vpack.c.bf16 %v826, %v826
        %v856 = vpack.c.bf16 %v829, %v829
        %v857 = vpack.c.bf16 %v831, %v831
        %v858 = vpack.c.bf16 %v834, %v834
        %v859 = vpack.c.bf16 %v836, %v836
        %v860 = vpack.c.bf16 %v839, %v839
        %v861 = vpack.c.bf16 %v841, %v841
        %v862 = vpack.c.bf16 %v844, %v844
        %v863 = vpack.c.bf16 %v846, %v846
        %v864 = vld [vmem:[%s470] sm:$0xf]
        %v865 = vld [vmem:[%s470 + $0x4] sm:$0xf]
        %v866 = vld [vmem:[%s470 + $0x8] sm:$0xf]
        %v867 = vld [vmem:[%s470 + $0xc] sm:$0xf]
        %v868 = vld [vmem:[%s470 + $0x10] sm:$0xf]
        %v869 = vld [vmem:[%s470 + $0x14] sm:$0xf]
        %v870 = vld [vmem:[%s470 + $0x18] sm:$0xf]
        %v871 = vld [vmem:[%s470 + $0x1c] sm:$0xf]
        %v872 = vld [vmem:[%s470 + $0x20] sm:$0xf]
        %v873 = vld [vmem:[%s470 + $0x24] sm:$0xf]
        %v874 = vld [vmem:[%s470 + $0x28] sm:$0xf]
        %v875 = vld [vmem:[%s470 + $0x2c] sm:$0xf]
        %v876 = vld [vmem:[%s470 + $0x30] sm:$0xf]
        %v877 = vld [vmem:[%s470 + $0x34] sm:$0xf]
        %v878 = vld [vmem:[%s470 + $0x38] sm:$0xf]
        %v879 = vld [vmem:[%s470 + $0x3c] sm:$0xf]
        %v880 = vunpack.c.l.bf16 %v848
        %v881 = vunpack.c.l.bf16 %v849
        %v882 = vunpack.c.l.bf16 %v850
        %v883 = vunpack.c.l.bf16 %v851
        %v884 = vunpack.c.l.bf16 %v852
        %v885 = vunpack.c.l.bf16 %v853
        %v886 = vunpack.c.l.bf16 %v854
        %v887 = vunpack.c.l.bf16 %v855
        %v888 = vunpack.c.l.bf16 %v856
        %v889 = vunpack.c.l.bf16 %v857
        %v890 = vunpack.c.l.bf16 %v858
        %v891 = vunpack.c.l.bf16 %v859
        %v892 = vunpack.c.l.bf16 %v860
        %v893 = vunpack.c.l.bf16 %v861
        %v894 = vunpack.c.l.bf16 %v862
        %v895 = vunpack.c.l.bf16 %v863
        %v896 = vunpack.c.l.bf16 %v864
        %v897 = vunpack.c.l.bf16 %v865
        %v898 = vunpack.c.l.bf16 %v866
        %v899 = vunpack.c.l.bf16 %v867
        %v900 = vunpack.c.l.bf16 %v868
        %v901 = vunpack.c.l.bf16 %v869
        %v902 = vunpack.c.l.bf16 %v870
        %v903 = vunpack.c.l.bf16 %v871
        %v904 = vunpack.c.l.bf16 %v872
        %v905 = vunpack.c.l.bf16 %v873
        %v906 = vunpack.c.l.bf16 %v874
        %v907 = vunpack.c.l.bf16 %v875
        %v908 = vunpack.c.l.bf16 %v876
        %v909 = vunpack.c.l.bf16 %v877
        %v910 = vunpack.c.l.bf16 %v878
        %v911 = vunpack.c.l.bf16 %v879
        %v912 = vadd.f32 %v880, %v896
        %v913 = vadd.f32 %v881, %v897
        %v914 = vadd.f32 %v882, %v898
        %v915 = vadd.f32 %v883, %v899
        %v916 = vadd.f32 %v884, %v900
        %v917 = vadd.f32 %v885, %v901
        %v918 = vadd.f32 %v886, %v902
        %v919 = vadd.f32 %v887, %v903
        %v920 = vadd.f32 %v888, %v904
        %v921 = vadd.f32 %v889, %v905
        %v922 = vadd.f32 %v890, %v906
        %v923 = vadd.f32 %v891, %v907
        %v924 = vadd.f32 %v892, %v908
        %v925 = vadd.f32 %v893, %v909
        %v926 = vadd.f32 %v894, %v910
        %v927 = vadd.f32 %v895, %v911
        %v928 = vpack.c.bf16 %v912, %v912
        %v929 = vpack.c.bf16 %v913, %v913
        %v930 = vpack.c.bf16 %v914, %v914
        %v931 = vpack.c.bf16 %v915, %v915
        %v932 = vpack.c.bf16 %v916, %v916
        %v933 = vpack.c.bf16 %v917, %v917
        %v934 = vpack.c.bf16 %v918, %v918
        %v935 = vpack.c.bf16 %v919, %v919
        %v936 = vpack.c.bf16 %v920, %v920
        %v937 = vpack.c.bf16 %v921, %v921
        %v938 = vpack.c.bf16 %v922, %v922
        %v939 = vpack.c.bf16 %v923, %v923
        %v940 = vpack.c.bf16 %v924, %v924
        %v941 = vpack.c.bf16 %v925, %v925
        %v942 = vpack.c.bf16 %v926, %v926
        %v943 = vpack.c.bf16 %v927, %v927
        %v944 = vunpack.c.l.bf16 %v928
        %v945 = vunpack.c.l.bf16 %v929
        %v946 = vunpack.c.l.bf16 %v930
        %v947 = vunpack.c.l.bf16 %v931
        %v948 = vunpack.c.l.bf16 %v932
        %v949 = vunpack.c.l.bf16 %v933
        %v950 = vunpack.c.l.bf16 %v934
        %v951 = vunpack.c.l.bf16 %v935
        %v952 = vunpack.c.l.bf16 %v936
        %v953 = vunpack.c.l.bf16 %v937
        %v954 = vunpack.c.l.bf16 %v938
        %v955 = vunpack.c.l.bf16 %v939
        %v956 = vunpack.c.l.bf16 %v940
        %v957 = vunpack.c.l.bf16 %v941
        %v958 = vunpack.c.l.bf16 %v942
        %v959 = vunpack.c.l.bf16 %v943
        %v960 = vmax.f32 %v944, 0.0
        %v961 = vmax.f32 %v945, 0.0
        %v962 = vmax.f32 %v946, 0.0
        %v963 = vmax.f32 %v947, 0.0
        %v964 = vmax.f32 %v948, 0.0
        %v965 = vmax.f32 %v949, 0.0
        %v966 = vmax.f32 %v950, 0.0
        %v967 = vmax.f32 %v951, 0.0
        %v968 = vmax.f32 %v952, 0.0
        %v969 = vmax.f32 %v953, 0.0
        %v970 = vmax.f32 %v954, 0.0
        %v971 = vmax.f32 %v955, 0.0
        %v972 = vmax.f32 %v956, 0.0
        %v973 = vmax.f32 %v957, 0.0
        %v974 = vmax.f32 %v958, 0.0
        %v975 = vmax.f32 %v959, 0.0
        %v976 = vpack.c.bf16 %v961, %v960
        %v977 = vpack.c.bf16 %v963, %v962
        %v978 = vpack.c.bf16 %v965, %v964
        %v979 = vpack.c.bf16 %v967, %v966
        %v980 = vpack.c.bf16 %v969, %v968
        %v981 = vpack.c.bf16 %v971, %v970
        %v982 = vpack.c.bf16 %v973, %v972
        %v983 = vpack.c.bf16 %v975, %v974
        %v984 = vld [vmem:[%s3] sm:$0xf]
        %v985 = vld [vmem:[%s3 + $0x4] sm:$0xf]
        %v986 = vld [vmem:[%s3 + $0x8] sm:$0xf]
        %v987 = vld [vmem:[%s3 + $0xc] sm:$0xf]
        %v988 = vld [vmem:[%s3 + $0x10] sm:$0xf]
        %v989 = vld [vmem:[%s3 + $0x14] sm:$0xf]
        %v990 = vld [vmem:[%s3 + $0x18] sm:$0xf]
        %v991 = vld [vmem:[%s3 + $0x1c] sm:$0xf]
        %v992 = vld [vmem:[%s3 + $0x20] sm:$0xf]
        %v993 = vld [vmem:[%s3 + $0x24] sm:$0xf]
        %v994 = vld [vmem:[%s3 + $0x28] sm:$0xf]
        %v995 = vld [vmem:[%s3 + $0x2c] sm:$0xf]
        %v996 = vld [vmem:[%s3 + $0x30] sm:$0xf]
        %v997 = vld [vmem:[%s3 + $0x34] sm:$0xf]
        %v998 = vld [vmem:[%s3 + $0x38] sm:$0xf]
        %v999 = vld [vmem:[%s3 + $0x3c] sm:$0xf]
        %v1016 = vunpack.c.l.b16 %v984
        %v1017 = vunpack.c.l.b16 %v985
        %v1018 = vunpack.c.l.b16 %v986
        %v1019 = vunpack.c.l.b16 %v987
        %v1020 = vunpack.c.l.b16 %v988
        %v1021 = vunpack.c.l.b16 %v989
        %v1022 = vunpack.c.l.b16 %v990
        %v1023 = vunpack.c.l.b16 %v991
        %v1024 = vunpack.c.l.b16 %v992
        %v1025 = vunpack.c.l.b16 %v993
        %v1026 = vunpack.c.l.b16 %v994
        %v1027 = vunpack.c.l.b16 %v995
        %v1028 = vunpack.c.l.b16 %v996
        %v1029 = vunpack.c.l.b16 %v997
        %v1030 = vunpack.c.l.b16 %v998
        %v1031 = vunpack.c.l.b16 %v999
        %v1032 = vpack.c.b16 %v1017, %v1016
        %v1033 = vpack.c.b16 %v1019, %v1018
        %v1034 = vpack.c.b16 %v1021, %v1020
        %v1035 = vpack.c.b16 %v1023, %v1022
        %v1036 = vpack.c.b16 %v1025, %v1024
        %v1037 = vpack.c.b16 %v1027, %v1026
        %v1038 = vpack.c.b16 %v1029, %v1028
        %v1039 = vpack.c.b16 %v1031, %v1030
        %1048 = vmatpush.bf16.msra.mxu0 %v983
        %1049 = vmatpush.bf16.msra.mxu0 %v982
        %1050 = vmatpush.bf16.msra.mxu0 %v981
        %1051 = vmatpush.bf16.msra.mxu0 %v980
        %1052 = vmatpush.bf16.msra.mxu0 %v979
        %1053 = vmatpush.bf16.msra.mxu0 %v978
        %1054 = vmatpush.bf16.msra.mxu0 %v977
        %1055 = vmatpush.bf16.msra.mxu0 %v976
        %1056 = vmatmul.bf16.gmra.mxu0 %v1032
        %v1057 = vpop.f32.mrf.mxu0
        %v1058 = vadd.f32 0.0, %v1057
        %v1059 = vpop.f32.mrf.mxu0
        %v1060 = vadd.f32 0.0, %v1059
        %1061 = vmatmul.bf16.gmra.mxu0 %v1033
        %v1062 = vpop.f32.mrf.mxu0
        %v1063 = vadd.f32 0.0, %v1062
        %v1064 = vpop.f32.mrf.mxu0
        %v1065 = vadd.f32 0.0, %v1064
        %1066 = vmatmul.bf16.gmra.mxu0 %v1034
        %v1067 = vpop.f32.mrf.mxu0
        %v1068 = vadd.f32 0.0, %v1067
        %v1069 = vpop.f32.mrf.mxu0
        %v1070 = vadd.f32 0.0, %v1069
        %1071 = vmatmul.bf16.gmra.mxu0 %v1035
        %v1072 = vpop.f32.mrf.mxu0
        %v1073 = vadd.f32 0.0, %v1072
        %v1074 = vpop.f32.mrf.mxu0
        %v1075 = vadd.f32 0.0, %v1074
        %1076 = vmatmul.bf16.gmra.mxu0 %v1036
        %v1077 = vpop.f32.mrf.mxu0
        %v1078 = vadd.f32 0.0, %v1077
        %v1079 = vpop.f32.mrf.mxu0
        %v1080 = vadd.f32 0.0, %v1079
        %1081 = vmatmul.bf16.gmra.mxu0 %v1037
        %v1082 = vpop.f32.mrf.mxu0
        %v1083 = vadd.f32 0.0, %v1082
        %v1084 = vpop.f32.mrf.mxu0
        %v1085 = vadd.f32 0.0, %v1084
        %1086 = vmatmul.bf16.gmra.mxu0 %v1038
        %v1087 = vpop.f32.mrf.mxu0
        %v1088 = vadd.f32 0.0, %v1087
        %v1089 = vpop.f32.mrf.mxu0
        %v1090 = vadd.f32 0.0, %v1089
        %1091 = vmatmul.bf16.gmra.mxu0 %v1039
        %v1092 = vpop.f32.mrf.mxu0
        %v1093 = vadd.f32 0.0, %v1092
        %v1094 = vpop.f32.mrf.mxu0
        %v1095 = vadd.f32 0.0, %v1094
        %1096 = vdwg.mxu0
        %v1097 = vld [vmem:[%s485] sm:$0xff]
        %v1098 = vld [vmem:[%s485 + $0x8] sm:$0xff]
        %v1099 = vld [vmem:[%s489] sm:$0xff]
        %s1100 = sld [smem:[#allocation4 + %s24]]
        %s1101 = sadd.f32 %s1100, 1.0
        %v1102 = vstv %s1101
        %v1103 = vmul.f32 %v1102, %v711
        %v1104 = vmul.f32 %v1102, %v712
        %v1105 = vmul.f32 %v1102, %v713
        %v1106 = vmul.f32 %v1102, %v714
        %v1107 = vmul.f32 %v1102, %v715
        %v1108 = vmul.f32 %v1102, %v716
        %v1109 = vmul.f32 %v1102, %v717
        %v1110 = vmul.f32 %v1102, %v718
        %v1111 = vmul.f32 %v1102, %v719
        %v1112 = vmul.f32 %v1102, %v720
        %v1113 = vmul.f32 %v1102, %v721
        %v1114 = vmul.f32 %v1102, %v722
        %v1115 = vmul.f32 %v1102, %v723
        %v1116 = vmul.f32 %v1102, %v724
        %v1117 = vmul.f32 %v1102, %v725
        %v1118 = vmul.f32 %v1102, %v726
        %v1119 = vadd.f32 %v1103, %v1058
        %v1120 = vadd.f32 %v1104, %v1060
        %v1121 = vadd.f32 %v1105, %v1063
        %v1122 = vadd.f32 %v1106, %v1065
        %v1123 = vadd.f32 %v1107, %v1068
        %v1124 = vadd.f32 %v1108, %v1070
        %v1125 = vadd.f32 %v1109, %v1073
        %v1126 = vadd.f32 %v1110, %v1075
        %v1127 = vadd.f32 %v1111, %v1078
        %v1128 = vadd.f32 %v1112, %v1080
        %v1129 = vadd.f32 %v1113, %v1083
        %v1130 = vadd.f32 %v1114, %v1085
        %v1131 = vadd.f32 %v1115, %v1088
        %v1132 = vadd.f32 %v1116, %v1090
        %v1133 = vadd.f32 %v1117, %v1093
        %v1134 = vadd.f32 %v1118, %v1095
        %v1135 = vpack.c.bf16 %v1120, %v1119
        %v1136 = vpack.c.bf16 %v1122, %v1121
        %v1137 = vpack.c.bf16 %v1124, %v1123
        %v1138 = vpack.c.bf16 %v1126, %v1125
        %v1139 = vpack.c.bf16 %v1128, %v1127
        %v1140 = vpack.c.bf16 %v1130, %v1129
        %v1141 = vpack.c.bf16 %v1132, %v1131
        %v1142 = vpack.c.bf16 %v1134, %v1133
        %v1143 = vld [vmem:[%s475] sm:$0xff]
        %v1144 = vld [vmem:[%s475 + $0x8] sm:$0xff]
        %v1145 = vld [vmem:[%s475 + $0x10] sm:$0xff]
        %v1146 = vld [vmem:[%s475 + $0x18] sm:$0xff]
        %v1147 = vld [vmem:[%s475 + $0x20] sm:$0xff]
        %v1148 = vld [vmem:[%s475 + $0x28] sm:$0xff]
        %v1149 = vld [vmem:[%s475 + $0x30] sm:$0xff]
        %v1150 = vld [vmem:[%s475 + $0x38] sm:$0xff]
        %v1151 = vld [vmem:[%s475 + $0x40] sm:$0xff]
        %v1152 = vld [vmem:[%s475 + $0x48] sm:$0xff]
        %v1153 = vld [vmem:[%s475 + $0x50] sm:$0xff]
        %v1154 = vld [vmem:[%s475 + $0x58] sm:$0xff]
        %v1155 = vld [vmem:[%s475 + $0x60] sm:$0xff]
        %v1156 = vld [vmem:[%s475 + $0x68] sm:$0xff]
        %v1157 = vld [vmem:[%s475 + $0x70] sm:$0xff]
        %v1158 = vld [vmem:[%s475 + $0x78] sm:$0xff]
        %v1175 = vunpack.c.l.b16 %v1143
        %v1176 = vunpack.c.h.b16 %v1143
        %v1177 = vunpack.c.l.b16 %v1144
        %v1178 = vunpack.c.h.b16 %v1144
        %v1179 = vunpack.c.l.b16 %v1145
        %v1180 = vunpack.c.h.b16 %v1145
        %v1181 = vunpack.c.l.b16 %v1146
        %v1182 = vunpack.c.h.b16 %v1146
        %v1183 = vunpack.c.l.b16 %v1147
        %v1184 = vunpack.c.h.b16 %v1147
        %v1185 = vunpack.c.l.b16 %v1148
        %v1186 = vunpack.c.h.b16 %v1148
        %v1187 = vunpack.c.l.b16 %v1149
        %v1188 = vunpack.c.h.b16 %v1149
        %v1189 = vunpack.c.l.b16 %v1150
        %v1190 = vunpack.c.h.b16 %v1150
        %v1191 = vunpack.c.l.b16 %v1151
        %v1192 = vunpack.c.h.b16 %v1151
        %v1193 = vunpack.c.l.b16 %v1152
        %v1194 = vunpack.c.h.b16 %v1152
        %v1195 = vunpack.c.l.b16 %v1153
        %v1196 = vunpack.c.h.b16 %v1153
        %v1197 = vunpack.c.l.b16 %v1154
        %v1198 = vunpack.c.h.b16 %v1154
        %v1199 = vunpack.c.l.b16 %v1155
        %v1200 = vunpack.c.h.b16 %v1155
        %v1201 = vunpack.c.l.b16 %v1156
        %v1202 = vunpack.c.h.b16 %v1156
        %v1203 = vunpack.c.l.b16 %v1157
        %v1204 = vunpack.c.h.b16 %v1157
        %v1205 = vunpack.c.l.b16 %v1158
        %v1206 = vunpack.c.h.b16 %v1158
        %v1207 = vpack.c.b16 %v1177, %v1175
        %v1208 = vpack.c.b16 %v1178, %v1176
        %v1209 = vpack.c.b16 %v1181, %v1179
        %v1210 = vpack.c.b16 %v1182, %v1180
        %v1211 = vpack.c.b16 %v1185, %v1183
        %v1212 = vpack.c.b16 %v1186, %v1184
        %v1213 = vpack.c.b16 %v1189, %v1187
        %v1214 = vpack.c.b16 %v1190, %v1188
        %v1215 = vpack.c.b16 %v1193, %v1191
        %v1216 = vpack.c.b16 %v1194, %v1192
        %v1217 = vpack.c.b16 %v1197, %v1195
        %v1218 = vpack.c.b16 %v1198, %v1196
        %v1219 = vpack.c.b16 %v1201, %v1199
        %v1220 = vpack.c.b16 %v1202, %v1200
        %v1221 = vpack.c.b16 %v1205, %v1203
        %v1222 = vpack.c.b16 %v1206, %v1204
        %1239 = vmatpush.bf16.msra.mxu0 %v1221
        %1240 = vmatpush.bf16.msra.mxu0 %v1219
        %1241 = vmatpush.bf16.msra.mxu0 %v1217
        %1242 = vmatpush.bf16.msra.mxu0 %v1215
        %1243 = vmatpush.bf16.msra.mxu0 %v1213
        %1244 = vmatpush.bf16.msra.mxu0 %v1211
        %1245 = vmatpush.bf16.msra.mxu0 %v1209
        %1246 = vmatpush.bf16.msra.mxu0 %v1207
        %1247 = vmatmul.bf16.gmra.mxu0 %v1135
        %v1248 = vpop.f32.mrf.mxu0
        %v1249 = vadd.f32 0.0, %v1248
        %v1250 = vpop.f32.mrf.mxu0
        %v1251 = vadd.f32 0.0, %v1250
        %1252 = vmatmul.bf16.gmra.mxu0 %v1136
        %v1253 = vpop.f32.mrf.mxu0
        %v1254 = vadd.f32 0.0, %v1253
        %v1255 = vpop.f32.mrf.mxu0
        %v1256 = vadd.f32 0.0, %v1255
        %1257 = vmatmul.bf16.gmra.mxu0 %v1137
        %v1258 = vpop.f32.mrf.mxu0
        %v1259 = vadd.f32 0.0, %v1258
        %v1260 = vpop.f32.mrf.mxu0
        %v1261 = vadd.f32 0.0, %v1260
        %1262 = vmatmul.bf16.gmra.mxu0 %v1138
        %v1263 = vpop.f32.mrf.mxu0
        %v1264 = vadd.f32 0.0, %v1263
        %v1265 = vpop.f32.mrf.mxu0
        %v1266 = vadd.f32 0.0, %v1265
        %1267 = vmatmul.bf16.gmra.mxu0 %v1139
        %v1268 = vpop.f32.mrf.mxu0
        %v1269 = vadd.f32 0.0, %v1268
        %v1270 = vpop.f32.mrf.mxu0
        %v1271 = vadd.f32 0.0, %v1270
        %1272 = vmatmul.bf16.gmra.mxu0 %v1140
        %v1273 = vpop.f32.mrf.mxu0
        %v1274 = vadd.f32 0.0, %v1273
        %v1275 = vpop.f32.mrf.mxu0
        %v1276 = vadd.f32 0.0, %v1275
        %1277 = vmatmul.bf16.gmra.mxu0 %v1141
        %v1278 = vpop.f32.mrf.mxu0
        %v1279 = vadd.f32 0.0, %v1278
        %v1280 = vpop.f32.mrf.mxu0
        %v1281 = vadd.f32 0.0, %v1280
        %1282 = vmatmul.bf16.gmra.mxu0 %v1142
        %v1283 = vpop.f32.mrf.mxu0
        %v1284 = vadd.f32 0.0, %v1283
        %v1285 = vpop.f32.mrf.mxu0
        %v1286 = vadd.f32 0.0, %v1285
        %1287 = vdwg.mxu0
        %1288 = vmatpush.bf16.msra.mxu0 %v1222
        %1289 = vmatpush.bf16.msra.mxu0 %v1220
        %1290 = vmatpush.bf16.msra.mxu0 %v1218
        %1291 = vmatpush.bf16.msra.mxu0 %v1216
        %1292 = vmatpush.bf16.msra.mxu0 %v1214
        %1293 = vmatpush.bf16.msra.mxu0 %v1212
        %1294 = vmatpush.bf16.msra.mxu0 %v1210
        %1295 = vmatpush.bf16.msra.mxu0 %v1208
        %1296 = vmatmul.bf16.gmra.mxu0 %v1135
        %v1297 = vpop.f32.mrf.mxu0
        %v1298 = vadd.f32 0.0, %v1297
        %v1299 = vpop.f32.mrf.mxu0
        %v1300 = vadd.f32 0.0, %v1299
        %1301 = vmatmul.bf16.gmra.mxu0 %v1136
        %v1302 = vpop.f32.mrf.mxu0
        %v1303 = vadd.f32 0.0, %v1302
        %v1304 = vpop.f32.mrf.mxu0
        %v1305 = vadd.f32 0.0, %v1304
        %1306 = vmatmul.bf16.gmra.mxu0 %v1137
        %v1307 = vpop.f32.mrf.mxu0
        %v1308 = vadd.f32 0.0, %v1307
        %v1309 = vpop.f32.mrf.mxu0
        %v1310 = vadd.f32 0.0, %v1309
        %1311 = vmatmul.bf16.gmra.mxu0 %v1138
        %v1312 = vpop.f32.mrf.mxu0
        %v1313 = vadd.f32 0.0, %v1312
        %v1314 = vpop.f32.mrf.mxu0
        %v1315 = vadd.f32 0.0, %v1314
        %1316 = vmatmul.bf16.gmra.mxu0 %v1139
        %v1317 = vpop.f32.mrf.mxu0
        %v1318 = vadd.f32 0.0, %v1317
        %v1319 = vpop.f32.mrf.mxu0
        %v1320 = vadd.f32 0.0, %v1319
        %1321 = vmatmul.bf16.gmra.mxu0 %v1140
        %v1322 = vpop.f32.mrf.mxu0
        %v1323 = vadd.f32 0.0, %v1322
        %v1324 = vpop.f32.mrf.mxu0
        %v1325 = vadd.f32 0.0, %v1324
        %1326 = vmatmul.bf16.gmra.mxu0 %v1141
        %v1327 = vpop.f32.mrf.mxu0
        %v1328 = vadd.f32 0.0, %v1327
        %v1329 = vpop.f32.mrf.mxu0
        %v1330 = vadd.f32 0.0, %v1329
        %1331 = vmatmul.bf16.gmra.mxu0 %v1142
        %v1332 = vpop.f32.mrf.mxu0
        %v1333 = vadd.f32 0.0, %v1332
        %v1334 = vpop.f32.mrf.mxu0
        %v1335 = vadd.f32 0.0, %v1334
        %1336 = vdwg.mxu0
        %v1337 = vperm.slane %v1097, 0
        %v1338 = vperm.slane %v1098, 0
        %v1339 = vmul.f32 %v1249, %v1337
        %v1340 = vmul.f32 %v1298, %v1338
        %v1341 = vmul.f32 %v1251, %v1337
        %v1342 = vmul.f32 %v1300, %v1338
        %v1343 = vmul.f32 %v1254, %v1337
        %v1344 = vmul.f32 %v1303, %v1338
        %v1345 = vmul.f32 %v1256, %v1337
        %v1346 = vmul.f32 %v1305, %v1338
        %v1347 = vmul.f32 %v1259, %v1337
        %v1348 = vmul.f32 %v1308, %v1338
        %v1349 = vmul.f32 %v1261, %v1337
        %v1350 = vmul.f32 %v1310, %v1338
        %v1351 = vmul.f32 %v1264, %v1337
        %v1352 = vmul.f32 %v1313, %v1338
        %v1353 = vmul.f32 %v1266, %v1337
        %v1354 = vmul.f32 %v1315, %v1338
        %v1355 = vmul.f32 %v1269, %v1337
        %v1356 = vmul.f32 %v1318, %v1338
        %v1357 = vmul.f32 %v1271, %v1337
        %v1358 = vmul.f32 %v1320, %v1338
        %v1359 = vmul.f32 %v1274, %v1337
        %v1360 = vmul.f32 %v1323, %v1338
        %v1361 = vmul.f32 %v1276, %v1337
        %v1362 = vmul.f32 %v1325, %v1338
        %v1363 = vmul.f32 %v1279, %v1337
        %v1364 = vmul.f32 %v1328, %v1338
        %v1365 = vmul.f32 %v1281, %v1337
        %v1366 = vmul.f32 %v1330, %v1338
        %v1367 = vmul.f32 %v1284, %v1337
        %v1368 = vmul.f32 %v1333, %v1338
        %v1369 = vmul.f32 %v1286, %v1337
        %v1370 = vmul.f32 %v1335, %v1338
        %v1371 = vperm.slane %v1097, 1
        %v1372 = vperm.slane %v1098, 1
        %v1373 = vadd.f32 %v1339, %v1371
        %v1374 = vadd.f32 %v1340, %v1372
        %v1375 = vadd.f32 %v1341, %v1371
        %v1376 = vadd.f32 %v1342, %v1372
        %v1377 = vadd.f32 %v1343, %v1371
        %v1378 = vadd.f32 %v1344, %v1372
        %v1379 = vadd.f32 %v1345, %v1371
        %v1380 = vadd.f32 %v1346, %v1372
        %v1381 = vadd.f32 %v1347, %v1371
        %v1382 = vadd.f32 %v1348, %v1372
        %v1383 = vadd.f32 %v1349, %v1371
        %v1384 = vadd.f32 %v1350, %v1372
        %v1385 = vadd.f32 %v1351, %v1371
        %v1386 = vadd.f32 %v1352, %v1372
        %v1387 = vadd.f32 %v1353, %v1371
        %v1388 = vadd.f32 %v1354, %v1372
        %v1389 = vadd.f32 %v1355, %v1371
        %v1390 = vadd.f32 %v1356, %v1372
        %v1391 = vadd.f32 %v1357, %v1371
        %v1392 = vadd.f32 %v1358, %v1372
        %v1393 = vadd.f32 %v1359, %v1371
        %v1394 = vadd.f32 %v1360, %v1372
        %v1395 = vadd.f32 %v1361, %v1371
        %v1396 = vadd.f32 %v1362, %v1372
        %v1397 = vadd.f32 %v1363, %v1371
        %v1398 = vadd.f32 %v1364, %v1372
        %v1399 = vadd.f32 %v1365, %v1371
        %v1400 = vadd.f32 %v1366, %v1372
        %v1401 = vadd.f32 %v1367, %v1371
        %v1402 = vadd.f32 %v1368, %v1372
        %v1403 = vadd.f32 %v1369, %v1371
        %v1404 = vadd.f32 %v1370, %v1372
        %v1405 = vmax.f32 %v1373, 0.0
        %v1406 = vmax.f32 %v1374, 0.0
        %v1407 = vmax.f32 %v1375, 0.0
        %v1408 = vmax.f32 %v1376, 0.0
        %v1409 = vmax.f32 %v1377, 0.0
        %v1410 = vmax.f32 %v1378, 0.0
        %v1411 = vmax.f32 %v1379, 0.0
        %v1412 = vmax.f32 %v1380, 0.0
        %v1413 = vmax.f32 %v1381, 0.0
        %v1414 = vmax.f32 %v1382, 0.0
        %v1415 = vmax.f32 %v1383, 0.0
        %v1416 = vmax.f32 %v1384, 0.0
        %v1417 = vmax.f32 %v1385, 0.0
        %v1418 = vmax.f32 %v1386, 0.0
        %v1419 = vmax.f32 %v1387, 0.0
        %v1420 = vmax.f32 %v1388, 0.0
        %v1421 = vmax.f32 %v1389, 0.0
        %v1422 = vmax.f32 %v1390, 0.0
        %v1423 = vmax.f32 %v1391, 0.0
        %v1424 = vmax.f32 %v1392, 0.0
        %v1425 = vmax.f32 %v1393, 0.0
        %v1426 = vmax.f32 %v1394, 0.0
        %v1427 = vmax.f32 %v1395, 0.0
        %v1428 = vmax.f32 %v1396, 0.0
        %v1429 = vmax.f32 %v1397, 0.0
        %v1430 = vmax.f32 %v1398, 0.0
        %v1431 = vmax.f32 %v1399, 0.0
        %v1432 = vmax.f32 %v1400, 0.0
        %v1433 = vmax.f32 %v1401, 0.0
        %v1434 = vmax.f32 %v1402, 0.0
        %v1435 = vmax.f32 %v1403, 0.0
        %v1436 = vmax.f32 %v1404, 0.0
        %v1437 = vpack.c.bf16 %v1407, %v1405
        %v1438 = vpack.c.bf16 %v1408, %v1406
        %v1439 = vpack.c.bf16 %v1411, %v1409
        %v1440 = vpack.c.bf16 %v1412, %v1410
        %v1441 = vpack.c.bf16 %v1415, %v1413
        %v1442 = vpack.c.bf16 %v1416, %v1414
        %v1443 = vpack.c.bf16 %v1419, %v1417
        %v1444 = vpack.c.bf16 %v1420, %v1418
        %v1445 = vpack.c.bf16 %v1423, %v1421
        %v1446 = vpack.c.bf16 %v1424, %v1422
        %v1447 = vpack.c.bf16 %v1427, %v1425
        %v1448 = vpack.c.bf16 %v1428, %v1426
        %v1449 = vpack.c.bf16 %v1431, %v1429
        %v1450 = vpack.c.bf16 %v1432, %v1430
        %v1451 = vpack.c.bf16 %v1435, %v1433
        %v1452 = vpack.c.bf16 %v1436, %v1434
        %v1453 = vld [vmem:[%s480] sm:$0xf]
        %v1454 = vld [vmem:[%s480 + $0x4] sm:$0xf]
        %v1455 = vld [vmem:[%s480 + $0x8] sm:$0xf]
        %v1456 = vld [vmem:[%s480 + $0xc] sm:$0xf]
        %v1457 = vld [vmem:[%s480 + $0x10] sm:$0xf]
        %v1458 = vld [vmem:[%s480 + $0x14] sm:$0xf]
        %v1459 = vld [vmem:[%s480 + $0x18] sm:$0xf]
        %v1460 = vld [vmem:[%s480 + $0x1c] sm:$0xf]
        %v1461 = vld [vmem:[%s480 + $0x20] sm:$0xf]
        %v1462 = vld [vmem:[%s480 + $0x24] sm:$0xf]
        %v1463 = vld [vmem:[%s480 + $0x28] sm:$0xf]
        %v1464 = vld [vmem:[%s480 + $0x2c] sm:$0xf]
        %v1465 = vld [vmem:[%s480 + $0x30] sm:$0xf]
        %v1466 = vld [vmem:[%s480 + $0x34] sm:$0xf]
        %v1467 = vld [vmem:[%s480 + $0x38] sm:$0xf]
        %v1468 = vld [vmem:[%s480 + $0x3c] sm:$0xf]
        %v1469 = vld [vmem:[%s480 + $0x40] sm:$0xf]
        %v1470 = vld [vmem:[%s480 + $0x44] sm:$0xf]
        %v1471 = vld [vmem:[%s480 + $0x48] sm:$0xf]
        %v1472 = vld [vmem:[%s480 + $0x4c] sm:$0xf]
        %v1473 = vld [vmem:[%s480 + $0x50] sm:$0xf]
        %v1474 = vld [vmem:[%s480 + $0x54] sm:$0xf]
        %v1475 = vld [vmem:[%s480 + $0x58] sm:$0xf]
        %v1476 = vld [vmem:[%s480 + $0x5c] sm:$0xf]
        %v1477 = vld [vmem:[%s480 + $0x60] sm:$0xf]
        %v1478 = vld [vmem:[%s480 + $0x64] sm:$0xf]
        %v1479 = vld [vmem:[%s480 + $0x68] sm:$0xf]
        %v1480 = vld [vmem:[%s480 + $0x6c] sm:$0xf]
        %v1481 = vld [vmem:[%s480 + $0x70] sm:$0xf]
        %v1482 = vld [vmem:[%s480 + $0x74] sm:$0xf]
        %v1483 = vld [vmem:[%s480 + $0x78] sm:$0xf]
        %v1484 = vld [vmem:[%s480 + $0x7c] sm:$0xf]
        %v1517 = vunpack.c.l.b16 %v1453
        %v1518 = vunpack.c.l.b16 %v1454
        %v1519 = vunpack.c.l.b16 %v1455
        %v1520 = vunpack.c.l.b16 %v1456
        %v1521 = vunpack.c.l.b16 %v1457
        %v1522 = vunpack.c.l.b16 %v1458
        %v1523 = vunpack.c.l.b16 %v1459
        %v1524 = vunpack.c.l.b16 %v1460
        %v1525 = vunpack.c.l.b16 %v1461
        %v1526 = vunpack.c.l.b16 %v1462
        %v1527 = vunpack.c.l.b16 %v1463
        %v1528 = vunpack.c.l.b16 %v1464
        %v1529 = vunpack.c.l.b16 %v1465
        %v1530 = vunpack.c.l.b16 %v1466
        %v1531 = vunpack.c.l.b16 %v1467
        %v1532 = vunpack.c.l.b16 %v1468
        %v1533 = vunpack.c.l.b16 %v1469
        %v1534 = vunpack.c.l.b16 %v1470
        %v1535 = vunpack.c.l.b16 %v1471
        %v1536 = vunpack.c.l.b16 %v1472
        %v1537 = vunpack.c.l.b16 %v1473
        %v1538 = vunpack.c.l.b16 %v1474
        %v1539 = vunpack.c.l.b16 %v1475
        %v1540 = vunpack.c.l.b16 %v1476
        %v1541 = vunpack.c.l.b16 %v1477
        %v1542 = vunpack.c.l.b16 %v1478
        %v1543 = vunpack.c.l.b16 %v1479
        %v1544 = vunpack.c.l.b16 %v1480
        %v1545 = vunpack.c.l.b16 %v1481
        %v1546 = vunpack.c.l.b16 %v1482
        %v1547 = vunpack.c.l.b16 %v1483
        %v1548 = vunpack.c.l.b16 %v1484
        %v1549 = vpack.c.b16 %v1518, %v1517
        %v1550 = vpack.c.b16 %v1520, %v1519
        %v1551 = vpack.c.b16 %v1522, %v1521
        %v1552 = vpack.c.b16 %v1524, %v1523
        %v1553 = vpack.c.b16 %v1526, %v1525
        %v1554 = vpack.c.b16 %v1528, %v1527
        %v1555 = vpack.c.b16 %v1530, %v1529
        %v1556 = vpack.c.b16 %v1532, %v1531
        %v1557 = vpack.c.b16 %v1534, %v1533
        %v1558 = vpack.c.b16 %v1536, %v1535
        %v1559 = vpack.c.b16 %v1538, %v1537
        %v1560 = vpack.c.b16 %v1540, %v1539
        %v1561 = vpack.c.b16 %v1542, %v1541
        %v1562 = vpack.c.b16 %v1544, %v1543
        %v1563 = vpack.c.b16 %v1546, %v1545
        %v1564 = vpack.c.b16 %v1548, %v1547
        %1581 = vmatpush.bf16.msra.mxu0 %v1556
        %1582 = vmatpush.bf16.msra.mxu0 %v1555
        %1583 = vmatpush.bf16.msra.mxu0 %v1554
        %1584 = vmatpush.bf16.msra.mxu0 %v1553
        %1585 = vmatpush.bf16.msra.mxu0 %v1552
        %1586 = vmatpush.bf16.msra.mxu0 %v1551
        %1587 = vmatpush.bf16.msra.mxu0 %v1550
        %1588 = vmatpush.bf16.msra.mxu0 %v1549
        %1589 = vmatmul.bf16.gmra.mxu0 %v1437
        %v1590 = vpop.f32.mrf.mxu0
        %v1591 = vadd.f32 0.0, %v1590
        %v1592 = vpop.f32.mrf.mxu0
        %v1593 = vadd.f32 0.0, %v1592
        %1594 = vmatmul.bf16.gmra.mxu0 %v1439
        %v1595 = vpop.f32.mrf.mxu0
        %v1596 = vadd.f32 0.0, %v1595
        %v1597 = vpop.f32.mrf.mxu0
        %v1598 = vadd.f32 0.0, %v1597
        %1599 = vmatmul.bf16.gmra.mxu0 %v1441
        %v1600 = vpop.f32.mrf.mxu0
        %v1601 = vadd.f32 0.0, %v1600
        %v1602 = vpop.f32.mrf.mxu0
        %v1603 = vadd.f32 0.0, %v1602
        %1604 = vmatmul.bf16.gmra.mxu0 %v1443
        %v1605 = vpop.f32.mrf.mxu0
        %v1606 = vadd.f32 0.0, %v1605
        %v1607 = vpop.f32.mrf.mxu0
        %v1608 = vadd.f32 0.0, %v1607
        %1609 = vmatmul.bf16.gmra.mxu0 %v1445
        %v1610 = vpop.f32.mrf.mxu0
        %v1611 = vadd.f32 0.0, %v1610
        %v1612 = vpop.f32.mrf.mxu0
        %v1613 = vadd.f32 0.0, %v1612
        %1614 = vmatmul.bf16.gmra.mxu0 %v1447
        %v1615 = vpop.f32.mrf.mxu0
        %v1616 = vadd.f32 0.0, %v1615
        %v1617 = vpop.f32.mrf.mxu0
        %v1618 = vadd.f32 0.0, %v1617
        %1619 = vmatmul.bf16.gmra.mxu0 %v1449
        %v1620 = vpop.f32.mrf.mxu0
        %v1621 = vadd.f32 0.0, %v1620
        %v1622 = vpop.f32.mrf.mxu0
        %v1623 = vadd.f32 0.0, %v1622
        %1624 = vmatmul.bf16.gmra.mxu0 %v1451
        %v1625 = vpop.f32.mrf.mxu0
        %v1626 = vadd.f32 0.0, %v1625
        %v1627 = vpop.f32.mrf.mxu0
        %v1628 = vadd.f32 0.0, %v1627
        %1629 = vdwg.mxu0
        %1630 = vmatpush.bf16.msra.mxu0 %v1564
        %1631 = vmatpush.bf16.msra.mxu0 %v1563
        %1632 = vmatpush.bf16.msra.mxu0 %v1562
        %1633 = vmatpush.bf16.msra.mxu0 %v1561
        %1634 = vmatpush.bf16.msra.mxu0 %v1560
        %1635 = vmatpush.bf16.msra.mxu0 %v1559
        %1636 = vmatpush.bf16.msra.mxu0 %v1558
        %1637 = vmatpush.bf16.msra.mxu0 %v1557
        %1638 = vmatmul.bf16.gmra.mxu0 %v1438
        %v1639 = vpop.f32.mrf.mxu0
        %v1640 = vadd.f32 %v1591, %v1639
        %v1641 = vpop.f32.mrf.mxu0
        %v1642 = vadd.f32 %v1593, %v1641
        %1643 = vmatmul.bf16.gmra.mxu0 %v1440
        %v1644 = vpop.f32.mrf.mxu0
        %v1645 = vadd.f32 %v1596, %v1644
        %v1646 = vpop.f32.mrf.mxu0
        %v1647 = vadd.f32 %v1598, %v1646
        %1648 = vmatmul.bf16.gmra.mxu0 %v1442
        %v1649 = vpop.f32.mrf.mxu0
        %v1650 = vadd.f32 %v1601, %v1649
        %v1651 = vpop.f32.mrf.mxu0
        %v1652 = vadd.f32 %v1603, %v1651
        %1653 = vmatmul.bf16.gmra.mxu0 %v1444
        %v1654 = vpop.f32.mrf.mxu0
        %v1655 = vadd.f32 %v1606, %v1654
        %v1656 = vpop.f32.mrf.mxu0
        %v1657 = vadd.f32 %v1608, %v1656
        %1658 = vmatmul.bf16.gmra.mxu0 %v1446
        %v1659 = vpop.f32.mrf.mxu0
        %v1660 = vadd.f32 %v1611, %v1659
        %v1661 = vpop.f32.mrf.mxu0
        %v1662 = vadd.f32 %v1613, %v1661
        %1663 = vmatmul.bf16.gmra.mxu0 %v1448
        %v1664 = vpop.f32.mrf.mxu0
        %v1665 = vadd.f32 %v1616, %v1664
        %v1666 = vpop.f32.mrf.mxu0
        %v1667 = vadd.f32 %v1618, %v1666
        %1668 = vmatmul.bf16.gmra.mxu0 %v1450
        %v1669 = vpop.f32.mrf.mxu0
        %v1670 = vadd.f32 %v1621, %v1669
        %v1671 = vpop.f32.mrf.mxu0
        %v1672 = vadd.f32 %v1623, %v1671
        %1673 = vmatmul.bf16.gmra.mxu0 %v1452
        %v1674 = vpop.f32.mrf.mxu0
        %v1675 = vadd.f32 %v1626, %v1674
        %v1676 = vpop.f32.mrf.mxu0
        %v1677 = vadd.f32 %v1628, %v1676
        %1678 = vdwg.mxu0
        %v1679 = vperm.slane %v1099, 0
        %v1680 = vmul.f32 %v1640, %v1679
        %v1681 = vmul.f32 %v1642, %v1679
        %v1682 = vmul.f32 %v1645, %v1679
        %v1683 = vmul.f32 %v1647, %v1679
        %v1684 = vmul.f32 %v1650, %v1679
        %v1685 = vmul.f32 %v1652, %v1679
        %v1686 = vmul.f32 %v1655, %v1679
        %v1687 = vmul.f32 %v1657, %v1679
        %v1688 = vmul.f32 %v1660, %v1679
        %v1689 = vmul.f32 %v1662, %v1679
        %v1690 = vmul.f32 %v1665, %v1679
        %v1691 = vmul.f32 %v1667, %v1679
        %v1692 = vmul.f32 %v1670, %v1679
        %v1693 = vmul.f32 %v1672, %v1679
        %v1694 = vmul.f32 %v1675, %v1679
        %v1695 = vmul.f32 %v1677, %v1679
        %v1696 = vperm.slane %v1099, 1
        %v1697 = vadd.f32 %v1680, %v1696
        %v1698 = vadd.f32 %v1681, %v1696
        %v1699 = vadd.f32 %v1682, %v1696
        %v1700 = vadd.f32 %v1683, %v1696
        %v1701 = vadd.f32 %v1684, %v1696
        %v1702 = vadd.f32 %v1685, %v1696
        %v1703 = vadd.f32 %v1686, %v1696
        %v1704 = vadd.f32 %v1687, %v1696
        %v1705 = vadd.f32 %v1688, %v1696
        %v1706 = vadd.f32 %v1689, %v1696
        %v1707 = vadd.f32 %v1690, %v1696
        %v1708 = vadd.f32 %v1691, %v1696
        %v1709 = vadd.f32 %v1692, %v1696
        %v1710 = vadd.f32 %v1693, %v1696
        %v1711 = vadd.f32 %v1694, %v1696
        %v1712 = vadd.f32 %v1695, %v1696
        %p1713 = scmp.lt.s32.totalorder %s24, 2
        // Predicated region
        $region77: #{gnn_graph_forward.1} parent=67 // pred_check
          %p1714 = pneg %p1713
        $region78: #{gnn_graph_forward.1} parent=67 // pred_check_branch
          %1716 = sbr.rel (%p1714) target = $region80
        $region79: #{gnn_graph_forward.1} parent=67 // pred_region
          %v1717 = vmax.f32 %v1697, 0.0
          %v1718 = vmax.f32 %v1698, 0.0
          %v1719 = vmax.f32 %v1699, 0.0
          %v1720 = vmax.f32 %v1700, 0.0
          %v1721 = vmax.f32 %v1701, 0.0
          %v1722 = vmax.f32 %v1702, 0.0
          %v1723 = vmax.f32 %v1703, 0.0
          %v1724 = vmax.f32 %v1704, 0.0
          %v1725 = vmax.f32 %v1705, 0.0
          %v1726 = vmax.f32 %v1706, 0.0
          %v1727 = vmax.f32 %v1707, 0.0
          %v1728 = vmax.f32 %v1708, 0.0
          %v1729 = vmax.f32 %v1709, 0.0
          %v1730 = vmax.f32 %v1710, 0.0
          %v1731 = vmax.f32 %v1711, 0.0
          %v1732 = vmax.f32 %v1712, 0.0
          %1733 = vst [vmem:[#allocation2] sm:$0xff] %v1717
          %1734 = vst [vmem:[#allocation2 + $0x8] sm:$0xff] %v1718
          %1735 = vst [vmem:[#allocation2 + $0x10] sm:$0xff] %v1719
          %1736 = vst [vmem:[#allocation2 + $0x18] sm:$0xff] %v1720
          %1737 = vst [vmem:[#allocation2 + $0x20] sm:$0xff] %v1721
          %1738 = vst [vmem:[#allocation2 + $0x28] sm:$0xff] %v1722
          %1739 = vst [vmem:[#allocation2 + $0x30] sm:$0xff] %v1723
          %1740 = vst [vmem:[#allocation2 + $0x38] sm:$0xff] %v1724
          %1741 = vst [vmem:[#allocation2 + $0x40] sm:$0xff] %v1725
          %1742 = vst [vmem:[#allocation2 + $0x48] sm:$0xff] %v1726
          %1743 = vst [vmem:[#allocation2 + $0x50] sm:$0xff] %v1727
          %1744 = vst [vmem:[#allocation2 + $0x58] sm:$0xff] %v1728
          %1745 = vst [vmem:[#allocation2 + $0x60] sm:$0xff] %v1729
          %1746 = vst [vmem:[#allocation2 + $0x68] sm:$0xff] %v1730
          %1747 = vst [vmem:[#allocation2 + $0x70] sm:$0xff] %v1731
          %1748 = vst [vmem:[#allocation2 + $0x78] sm:$0xff] %v1732
          %v1749 = vld [vmem:[%s5] sm:$0xf]
          %v1750 = vld [vmem:[%s5 + $0x4] sm:$0xf]
          %v1751 = vld [vmem:[%s5 + $0x8] sm:$0xf]
          %v1752 = vld [vmem:[%s5 + $0xc] sm:$0xf]
          %v1753 = vld [vmem:[%s5 + $0x10] sm:$0xf]
          %v1754 = vld [vmem:[%s5 + $0x14] sm:$0xf]
          %v1755 = vld [vmem:[%s5 + $0x18] sm:$0xf]
          %v1756 = vld [vmem:[%s5 + $0x1c] sm:$0xf]
          %v1757 = vld [vmem:[%s5 + $0x20] sm:$0xf]
          %v1758 = vld [vmem:[%s5 + $0x24] sm:$0xf]
          %v1759 = vld [vmem:[%s5 + $0x28] sm:$0xf]
          %v1760 = vld [vmem:[%s5 + $0x2c] sm:$0xf]
          %v1761 = vld [vmem:[%s5 + $0x30] sm:$0xf]
          %v1762 = vld [vmem:[%s5 + $0x34] sm:$0xf]
          %v1763 = vld [vmem:[%s5 + $0x38] sm:$0xf]
          %v1764 = vld [vmem:[%s5 + $0x3c] sm:$0xf]
          %v1765 = vld [vmem:[#allocation3] sm:$0xff]
          %v1766 = vld [vmem:[#allocation3 + $0x8] sm:$0xff]
          %v1767 = vld [vmem:[#allocation3 + $0x10] sm:$0xff]
          %v1768 = vld [vmem:[#allocation3 + $0x18] sm:$0xff]
          %v1769 = vld [vmem:[#allocation3 + $0x20] sm:$0xff]
          %v1770 = vld [vmem:[#allocation3 + $0x28] sm:$0xff]
          %v1771 = vld [vmem:[#allocation3 + $0x30] sm:$0xff]
          %v1772 = vld [vmem:[#allocation3 + $0x38] sm:$0xff]
          %v1773 = vld [vmem:[#allocation3 + $0x40] sm:$0xff]
          %v1774 = vld [vmem:[#allocation3 + $0x48] sm:$0xff]
          %v1775 = vld [vmem:[#allocation3 + $0x50] sm:$0xff]
          %v1776 = vld [vmem:[#allocation3 + $0x58] sm:$0xff]
          %v1777 = vld [vmem:[#allocation3 + $0x60] sm:$0xff]
          %v1778 = vld [vmem:[#allocation3 + $0x68] sm:$0xff]
          %v1779 = vld [vmem:[#allocation3 + $0x70] sm:$0xff]
          %v1780 = vld [vmem:[#allocation3 + $0x78] sm:$0xff]
          %v1797 = vunpack.c.l.b16 %v1749
          %v1798 = vunpack.c.l.b16 %v1750
          %v1799 = vunpack.c.l.b16 %v1751
          %v1800 = vunpack.c.l.b16 %v1752
          %v1801 = vunpack.c.l.b16 %v1753
          %v1802 = vunpack.c.l.b16 %v1754
          %v1803 = vunpack.c.l.b16 %v1755
          %v1804 = vunpack.c.l.b16 %v1756
          %v1805 = vunpack.c.l.b16 %v1757
          %v1806 = vunpack.c.l.b16 %v1758
          %v1807 = vunpack.c.l.b16 %v1759
          %v1808 = vunpack.c.l.b16 %v1760
          %v1809 = vunpack.c.l.b16 %v1761
          %v1810 = vunpack.c.l.b16 %v1762
          %v1811 = vunpack.c.l.b16 %v1763
          %v1812 = vunpack.c.l.b16 %v1764
          %v1813 = vpack.c.b16 %v1798, %v1797
          %v1814 = vpack.c.b16 %v1800, %v1799
          %v1815 = vpack.c.b16 %v1802, %v1801
          %v1816 = vpack.c.b16 %v1804, %v1803
          %v1817 = vpack.c.b16 %v1806, %v1805
          %v1818 = vpack.c.b16 %v1808, %v1807
          %v1819 = vpack.c.b16 %v1810, %v1809
          %v1820 = vpack.c.b16 %v1812, %v1811
          %1829 = vmatpush.bf16.msra.mxu0 %v734
          %1830 = vmatpush.bf16.msra.mxu0 %v733
          %1831 = vmatpush.bf16.msra.mxu0 %v732
          %1832 = vmatpush.bf16.msra.mxu0 %v731
          %1833 = vmatpush.bf16.msra.mxu0 %v730
          %1834 = vmatpush.bf16.msra.mxu0 %v729
          %1835 = vmatpush.bf16.msra.mxu0 %v728
          %1836 = vmatpush.bf16.msra.mxu0 %v727
          %1837 = vmatmul.bf16.gmra.mxu0 %v1813
          %v1838 = vpop.f32.mrf.mxu0
          %v1839 = vadd.f32 %v1765, %v1838
          %v1840 = vpop.f32.mrf.mxu0
          %v1841 = vadd.f32 %v1766, %v1840
          %1842 = vmatmul.bf16.gmra.mxu0 %v1814
          %v1843 = vpop.f32.mrf.mxu0
          %v1844 = vadd.f32 %v1767, %v1843
          %v1845 = vpop.f32.mrf.mxu0
          %v1846 = vadd.f32 %v1768, %v1845
          %1847 = vmatmul.bf16.gmra.mxu0 %v1815
          %v1848 = vpop.f32.mrf.mxu0
          %v1849 = vadd.f32 %v1769, %v1848
          %v1850 = vpop.f32.mrf.mxu0
          %v1851 = vadd.f32 %v1770, %v1850
          %1852 = vmatmul.bf16.gmra.mxu0 %v1816
          %v1853 = vpop.f32.mrf.mxu0
          %v1854 = vadd.f32 %v1771, %v1853
          %v1855 = vpop.f32.mrf.mxu0
          %v1856 = vadd.f32 %v1772, %v1855
          %1857 = vmatmul.bf16.gmra.mxu0 %v1817
          %v1858 = vpop.f32.mrf.mxu0
          %v1859 = vadd.f32 %v1773, %v1858
          %v1860 = vpop.f32.mrf.mxu0
          %v1861 = vadd.f32 %v1774, %v1860
          %1862 = vmatmul.bf16.gmra.mxu0 %v1818
          %v1863 = vpop.f32.mrf.mxu0
          %v1864 = vadd.f32 %v1775, %v1863
          %v1865 = vpop.f32.mrf.mxu0
          %v1866 = vadd.f32 %v1776, %v1865
          %1867 = vmatmul.bf16.gmra.mxu0 %v1819
          %v1868 = vpop.f32.mrf.mxu0
          %v1869 = vadd.f32 %v1777, %v1868
          %v1870 = vpop.f32.mrf.mxu0
          %v1871 = vadd.f32 %v1778, %v1870
          %1872 = vmatmul.bf16.gmra.mxu0 %v1820
          %v1873 = vpop.f32.mrf.mxu0
          %v1874 = vadd.f32 %v1779, %v1873
          %v1875 = vpop.f32.mrf.mxu0
          %v1876 = vadd.f32 %v1780, %v1875
          %1877 = vdwg.mxu0
          %v1878 = vpack.c.bf16 %v1841, %v1839
          %v1879 = vpack.c.bf16 %v1846, %v1844
          %v1880 = vpack.c.bf16 %v1851, %v1849
          %v1881 = vpack.c.bf16 %v1856, %v1854
          %v1882 = vpack.c.bf16 %v1861, %v1859
          %v1883 = vpack.c.bf16 %v1866, %v1864
          %v1884 = vpack.c.bf16 %v1871, %v1869
          %v1885 = vpack.c.bf16 %v1876, %v1874
          %s1886 = scalar_lea.vmem %s475, 128
          %v1887 = vld [vmem:[%s1886] sm:$0xff]
          %v1888 = vld [vmem:[%s1886 + $0x8] sm:$0xff]
          %v1889 = vld [vmem:[%s1886 + $0x10] sm:$0xff]
          %v1890 = vld [vmem:[%s1886 + $0x18] sm:$0xff]
          %v1891 = vld [vmem:[%s1886 + $0x20] sm:$0xff]
          %v1892 = vld [vmem:[%s1886 + $0x28] sm:$0xff]
          %v1893 = vld [vmem:[%s1886 + $0x30] sm:$0xff]
          %v1894 = vld [vmem:[%s1886 + $0x38] sm:$0xff]
          %v1895 = vld [vmem:[%s1886 + $0x40] sm:$0xff]
          %v1896 = vld [vmem:[%s1886 + $0x48] sm:$0xff]
          %v1897 = vld [vmem:[%s1886 + $0x50] sm:$0xff]
          %v1898 = vld [vmem:[%s1886 + $0x58] sm:$0xff]
          %v1899 = vld [vmem:[%s1886 + $0x60] sm:$0xff]
          %v1900 = vld [vmem:[%s1886 + $0x68] sm:$0xff]
          %v1901 = vld [vmem:[%s1886 + $0x70] sm:$0xff]
          %v1902 = vld [vmem:[%s1886 + $0x78] sm:$0xff]
          %v1919 = vunpack.c.l.b16 %v1887
          %v1920 = vunpack.c.h.b16 %v1887
          %v1921 = vunpack.c.l.b16 %v1888
          %v1922 = vunpack.c.h.b16 %v1888
          %v1923 = vunpack.c.l.b16 %v1889
          %v1924 = vunpack.c.h.b16 %v1889
          %v1925 = vunpack.c.l.b16 %v1890
          %v1926 = vunpack.c.h.b16 %v1890
          %v1927 = vunpack.c.l.b16 %v1891
          %v1928 = vunpack.c.h.b16 %v1891
          %v1929 = vunpack.c.l.b16 %v1892
          %v1930 = vunpack.c.h.b16 %v1892
          %v1931 = vunpack.c.l.b16 %v1893
          %v1932 = vunpack.c.h.b16 %v1893
          %v1933 = vunpack.c.l.b16 %v1894
          %v1934 = vunpack.c.h.b16 %v1894
          %v1935 = vunpack.c.l.b16 %v1895
          %v1936 = vunpack.c.h.b16 %v1895
          %v1937 = vunpack.c.l.b16 %v1896
          %v1938 = vunpack.c.h.b16 %v1896
          %v1939 = vunpack.c.l.b16 %v1897
          %v1940 = vunpack.c.h.b16 %v1897
          %v1941 = vunpack.c.l.b16 %v1898
          %v1942 = vunpack.c.h.b16 %v1898
          %v1943 = vunpack.c.l.b16 %v1899
          %v1944 = vunpack.c.h.b16 %v1899
          %v1945 = vunpack.c.l.b16 %v1900
          %v1946 = vunpack.c.h.b16 %v1900
          %v1947 = vunpack.c.l.b16 %v1901
          %v1948 = vunpack.c.h.b16 %v1901
          %v1949 = vunpack.c.l.b16 %v1902
          %v1950 = vunpack.c.h.b16 %v1902
          %v1951 = vpack.c.b16 %v1921, %v1919
          %v1952 = vpack.c.b16 %v1922, %v1920
          %v1953 = vpack.c.b16 %v1925, %v1923
          %v1954 = vpack.c.b16 %v1926, %v1924
          %v1955 = vpack.c.b16 %v1929, %v1927
          %v1956 = vpack.c.b16 %v1930, %v1928
          %v1957 = vpack.c.b16 %v1933, %v1931
          %v1958 = vpack.c.b16 %v1934, %v1932
          %v1959 = vpack.c.b16 %v1937, %v1935
          %v1960 = vpack.c.b16 %v1938, %v1936
          %v1961 = vpack.c.b16 %v1941, %v1939
          %v1962 = vpack.c.b16 %v1942, %v1940
          %v1963 = vpack.c.b16 %v1945, %v1943
          %v1964 = vpack.c.b16 %v1946, %v1944
          %v1965 = vpack.c.b16 %v1949, %v1947
          %v1966 = vpack.c.b16 %v1950, %v1948
          %1983 = vmatpush.bf16.msra.mxu0 %v1965
          %1984 = vmatpush.bf16.msra.mxu0 %v1963
          %1985 = vmatpush.bf16.msra.mxu0 %v1961
          %1986 = vmatpush.bf16.msra.mxu0 %v1959
          %1987 = vmatpush.bf16.msra.mxu0 %v1957
          %1988 = vmatpush.bf16.msra.mxu0 %v1955
          %1989 = vmatpush.bf16.msra.mxu0 %v1953
          %1990 = vmatpush.bf16.msra.mxu0 %v1951
          %1991 = vmatmul.bf16.gmra.mxu0 %v1878
          %v1992 = vpop.f32.mrf.mxu0
          %v1993 = vadd.f32 0.0, %v1992
          %v1994 = vpop.f32.mrf.mxu0
          %v1995 = vadd.f32 0.0, %v1994
          %1996 = vmatmul.bf16.gmra.mxu0 %v1879
          %v1997 = vpop.f32.mrf.mxu0
          %v1998 = vadd.f32 0.0, %v1997
          %v1999 = vpop.f32.mrf.mxu0
          %v2000 = vadd.f32 0.0, %v1999
          %2001 = vmatmul.bf16.gmra.mxu0 %v1880
          %v2002 = vpop.f32.mrf.mxu0
          %v2003 = vadd.f32 0.0, %v2002
          %v2004 = vpop.f32.mrf.mxu0
          %v2005 = vadd.f32 0.0, %v2004
          %2006 = vmatmul.bf16.gmra.mxu0 %v1881
          %v2007 = vpop.f32.mrf.mxu0
          %v2008 = vadd.f32 0.0, %v2007
          %v2009 = vpop.f32.mrf.mxu0
          %v2010 = vadd.f32 0.0, %v2009
          %2011 = vmatmul.bf16.gmra.mxu0 %v1882
          %v2012 = vpop.f32.mrf.mxu0
          %v2013 = vadd.f32 0.0, %v2012
          %v2014 = vpop.f32.mrf.mxu0
          %v2015 = vadd.f32 0.0, %v2014
          %2016 = vmatmul.bf16.gmra.mxu0 %v1883
          %v2017 = vpop.f32.mrf.mxu0
          %v2018 = vadd.f32 0.0, %v2017
          %v2019 = vpop.f32.mrf.mxu0
          %v2020 = vadd.f32 0.0, %v2019
          %2021 = vmatmul.bf16.gmra.mxu0 %v1884
          %v2022 = vpop.f32.mrf.mxu0
          %v2023 = vadd.f32 0.0, %v2022
          %v2024 = vpop.f32.mrf.mxu0
          %v2025 = vadd.f32 0.0, %v2024
          %2026 = vmatmul.bf16.gmra.mxu0 %v1885
          %v2027 = vpop.f32.mrf.mxu0
          %v2028 = vadd.f32 0.0, %v2027
          %v2029 = vpop.f32.mrf.mxu0
          %v2030 = vadd.f32 0.0, %v2029
          %2031 = vdwg.mxu0
          %2032 = vmatpush.bf16.msra.mxu0 %v1966
          %2033 = vmatpush.bf16.msra.mxu0 %v1964
          %2034 = vmatpush.bf16.msra.mxu0 %v1962
          %2035 = vmatpush.bf16.msra.mxu0 %v1960
          %2036 = vmatpush.bf16.msra.mxu0 %v1958
          %2037 = vmatpush.bf16.msra.mxu0 %v1956
          %2038 = vmatpush.bf16.msra.mxu0 %v1954
          %2039 = vmatpush.bf16.msra.mxu0 %v1952
          %2040 = vmatmul.bf16.gmra.mxu0 %v1878
          %v2041 = vpop.f32.mrf.mxu0
          %v2042 = vadd.f32 0.0, %v2041
          %v2043 = vpop.f32.mrf.mxu0
          %v2044 = vadd.f32 0.0, %v2043
          %2045 = vmatmul.bf16.gmra.mxu0 %v1879
          %v2046 = vpop.f32.mrf.mxu0
          %v2047 = vadd.f32 0.0, %v2046
          %v2048 = vpop.f32.mrf.mxu0
          %v2049 = vadd.f32 0.0, %v2048
          %2050 = vmatmul.bf16.gmra.mxu0 %v1880
          %v2051 = vpop.f32.mrf.mxu0
          %v2052 = vadd.f32 0.0, %v2051
          %v2053 = vpop.f32.mrf.mxu0
          %v2054 = vadd.f32 0.0, %v2053
          %2055 = vmatmul.bf16.gmra.mxu0 %v1881
          %v2056 = vpop.f32.mrf.mxu0
          %v2057 = vadd.f32 0.0, %v2056
          %v2058 = vpop.f32.mrf.mxu0
          %v2059 = vadd.f32 0.0, %v2058
          %2060 = vmatmul.bf16.gmra.mxu0 %v1882
          %v2061 = vpop.f32.mrf.mxu0
          %v2062 = vadd.f32 0.0, %v2061
          %v2063 = vpop.f32.mrf.mxu0
          %v2064 = vadd.f32 0.0, %v2063
          %2065 = vmatmul.bf16.gmra.mxu0 %v1883
          %v2066 = vpop.f32.mrf.mxu0
          %v2067 = vadd.f32 0.0, %v2066
          %v2068 = vpop.f32.mrf.mxu0
          %v2069 = vadd.f32 0.0, %v2068
          %2070 = vmatmul.bf16.gmra.mxu0 %v1884
          %v2071 = vpop.f32.mrf.mxu0
          %v2072 = vadd.f32 0.0, %v2071
          %v2073 = vpop.f32.mrf.mxu0
          %v2074 = vadd.f32 0.0, %v2073
          %2075 = vmatmul.bf16.gmra.mxu0 %v1885
          %v2076 = vpop.f32.mrf.mxu0
          %v2077 = vadd.f32 0.0, %v2076
          %v2078 = vpop.f32.mrf.mxu0
          %v2079 = vadd.f32 0.0, %v2078
          %2080 = vdwg.mxu0
          %v2081 = vperm.slane %v1097, 2
          %v2082 = vperm.slane %v1098, 2
          %v2083 = vmul.f32 %v1993, %v2081
          %v2084 = vmul.f32 %v2042, %v2082
          %v2085 = vmul.f32 %v1995, %v2081
          %v2086 = vmul.f32 %v2044, %v2082
          %v2087 = vmul.f32 %v1998, %v2081
          %v2088 = vmul.f32 %v2047, %v2082
          %v2089 = vmul.f32 %v2000, %v2081
          %v2090 = vmul.f32 %v2049, %v2082
          %v2091 = vmul.f32 %v2003, %v2081
          %v2092 = vmul.f32 %v2052, %v2082
          %v2093 = vmul.f32 %v2005, %v2081
          %v2094 = vmul.f32 %v2054, %v2082
          %v2095 = vmul.f32 %v2008, %v2081
          %v2096 = vmul.f32 %v2057, %v2082
          %v2097 = vmul.f32 %v2010, %v2081
          %v2098 = vmul.f32 %v2059, %v2082
          %v2099 = vmul.f32 %v2013, %v2081
          %v2100 = vmul.f32 %v2062, %v2082
          %v2101 = vmul.f32 %v2015, %v2081
          %v2102 = vmul.f32 %v2064, %v2082
          %v2103 = vmul.f32 %v2018, %v2081
          %v2104 = vmul.f32 %v2067, %v2082
          %v2105 = vmul.f32 %v2020, %v2081
          %v2106 = vmul.f32 %v2069, %v2082
          %v2107 = vmul.f32 %v2023, %v2081
          %v2108 = vmul.f32 %v2072, %v2082
          %v2109 = vmul.f32 %v2025, %v2081
          %v2110 = vmul.f32 %v2074, %v2082
          %v2111 = vmul.f32 %v2028, %v2081
          %v2112 = vmul.f32 %v2077, %v2082
          %v2113 = vmul.f32 %v2030, %v2081
          %v2114 = vmul.f32 %v2079, %v2082
          %v2115 = vperm.slane %v1097, 3
          %v2116 = vperm.slane %v1098, 3
          %v2117 = vadd.f32 %v2083, %v2115
          %v2118 = vadd.f32 %v2084, %v2116
          %v2119 = vadd.f32 %v2085, %v2115
          %v2120 = vadd.f32 %v2086, %v2116
          %v2121 = vadd.f32 %v2087, %v2115
          %v2122 = vadd.f32 %v2088, %v2116
          %v2123 = vadd.f32 %v2089, %v2115
          %v2124 = vadd.f32 %v2090, %v2116
          %v2125 = vadd.f32 %v2091, %v2115
          %v2126 = vadd.f32 %v2092, %v2116
          %v2127 = vadd.f32 %v2093, %v2115
          %v2128 = vadd.f32 %v2094, %v2116
          %v2129 = vadd.f32 %v2095, %v2115
          %v2130 = vadd.f32 %v2096, %v2116
          %v2131 = vadd.f32 %v2097, %v2115
          %v2132 = vadd.f32 %v2098, %v2116
          %v2133 = vadd.f32 %v2099, %v2115
          %v2134 = vadd.f32 %v2100, %v2116
          %v2135 = vadd.f32 %v2101, %v2115
          %v2136 = vadd.f32 %v2102, %v2116
          %v2137 = vadd.f32 %v2103, %v2115
          %v2138 = vadd.f32 %v2104, %v2116
          %v2139 = vadd.f32 %v2105, %v2115
          %v2140 = vadd.f32 %v2106, %v2116
          %v2141 = vadd.f32 %v2107, %v2115
          %v2142 = vadd.f32 %v2108, %v2116
          %v2143 = vadd.f32 %v2109, %v2115
          %v2144 = vadd.f32 %v2110, %v2116
          %v2145 = vadd.f32 %v2111, %v2115
          %v2146 = vadd.f32 %v2112, %v2116
          %v2147 = vadd.f32 %v2113, %v2115
          %v2148 = vadd.f32 %v2114, %v2116
          %v2149 = vmax.f32 %v2117, 0.0
          %v2150 = vmax.f32 %v2118, 0.0
          %v2151 = vmax.f32 %v2119, 0.0
          %v2152 = vmax.f32 %v2120, 0.0
          %v2153 = vmax.f32 %v2121, 0.0
          %v2154 = vmax.f32 %v2122, 0.0
          %v2155 = vmax.f32 %v2123, 0.0
          %v2156 = vmax.f32 %v2124, 0.0
          %v2157 = vmax.f32 %v2125, 0.0
          %v2158 = vmax.f32 %v2126, 0.0
          %v2159 = vmax.f32 %v2127, 0.0
          %v2160 = vmax.f32 %v2128, 0.0
          %v2161 = vmax.f32 %v2129, 0.0
          %v2162 = vmax.f32 %v2130, 0.0
          %v2163 = vmax.f32 %v2131, 0.0
          %v2164 = vmax.f32 %v2132, 0.0
          %v2165 = vmax.f32 %v2133, 0.0
          %v2166 = vmax.f32 %v2134, 0.0
          %v2167 = vmax.f32 %v2135, 0.0
          %v2168 = vmax.f32 %v2136, 0.0
          %v2169 = vmax.f32 %v2137, 0.0
          %v2170 = vmax.f32 %v2138, 0.0
          %v2171 = vmax.f32 %v2139, 0.0
          %v2172 = vmax.f32 %v2140, 0.0
          %v2173 = vmax.f32 %v2141, 0.0
          %v2174 = vmax.f32 %v2142, 0.0
          %v2175 = vmax.f32 %v2143, 0.0
          %v2176 = vmax.f32 %v2144, 0.0
          %v2177 = vmax.f32 %v2145, 0.0
          %v2178 = vmax.f32 %v2146, 0.0
          %v2179 = vmax.f32 %v2147, 0.0
          %v2180 = vmax.f32 %v2148, 0.0
          %v2181 = vpack.c.bf16 %v2151, %v2149
          %v2182 = vpack.c.bf16 %v2152, %v2150
          %v2183 = vpack.c.bf16 %v2155, %v2153
          %v2184 = vpack.c.bf16 %v2156, %v2154
          %v2185 = vpack.c.bf16 %v2159, %v2157
          %v2186 = vpack.c.bf16 %v2160, %v2158
          %v2187 = vpack.c.bf16 %v2163, %v2161
          %v2188 = vpack.c.bf16 %v2164, %v2162
          %v2189 = vpack.c.bf16 %v2167, %v2165
          %v2190 = vpack.c.bf16 %v2168, %v2166
          %v2191 = vpack.c.bf16 %v2171, %v2169
          %v2192 = vpack.c.bf16 %v2172, %v2170
          %v2193 = vpack.c.bf16 %v2175, %v2173
          %v2194 = vpack.c.bf16 %v2176, %v2174
          %v2195 = vpack.c.bf16 %v2179, %v2177
          %v2196 = vpack.c.bf16 %v2180, %v2178
          %s2197 = scalar_lea.vmem %s480, 128
          %v2198 = vld [vmem:[%s2197] sm:$0xf]
          %v2199 = vld [vmem:[%s2197 + $0x4] sm:$0xf]
          %v2200 = vld [vmem:[%s2197 + $0x8] sm:$0xf]
          %v2201 = vld [vmem:[%s2197 + $0xc] sm:$0xf]
          %v2202 = vld [vmem:[%s2197 + $0x10] sm:$0xf]
          %v2203 = vld [vmem:[%s2197 + $0x14] sm:$0xf]
          %v2204 = vld [vmem:[%s2197 + $0x18] sm:$0xf]
          %v2205 = vld [vmem:[%s2197 + $0x1c] sm:$0xf]
          %v2206 = vld [vmem:[%s2197 + $0x20] sm:$0xf]
          %v2207 = vld [vmem:[%s2197 + $0x24] sm:$0xf]
          %v2208 = vld [vmem:[%s2197 + $0x28] sm:$0xf]
          %v2209 = vld [vmem:[%s2197 + $0x2c] sm:$0xf]
          %v2210 = vld [vmem:[%s2197 + $0x30] sm:$0xf]
          %v2211 = vld [vmem:[%s2197 + $0x34] sm:$0xf]
          %v2212 = vld [vmem:[%s2197 + $0x38] sm:$0xf]
          %v2213 = vld [vmem:[%s2197 + $0x3c] sm:$0xf]
          %v2214 = vld [vmem:[%s2197 + $0x40] sm:$0xf]
          %v2215 = vld [vmem:[%s2197 + $0x44] sm:$0xf]
          %v2216 = vld [vmem:[%s2197 + $0x48] sm:$0xf]
          %v2217 = vld [vmem:[%s2197 + $0x4c] sm:$0xf]
          %v2218 = vld [vmem:[%s2197 + $0x50] sm:$0xf]
          %v2219 = vld [vmem:[%s2197 + $0x54] sm:$0xf]
          %v2220 = vld [vmem:[%s2197 + $0x58] sm:$0xf]
          %v2221 = vld [vmem:[%s2197 + $0x5c] sm:$0xf]
          %v2222 = vld [vmem:[%s2197 + $0x60] sm:$0xf]
          %v2223 = vld [vmem:[%s2197 + $0x64] sm:$0xf]
          %v2224 = vld [vmem:[%s2197 + $0x68] sm:$0xf]
          %v2225 = vld [vmem:[%s2197 + $0x6c] sm:$0xf]
          %v2226 = vld [vmem:[%s2197 + $0x70] sm:$0xf]
          %v2227 = vld [vmem:[%s2197 + $0x74] sm:$0xf]
          %v2228 = vld [vmem:[%s2197 + $0x78] sm:$0xf]
          %v2229 = vld [vmem:[%s2197 + $0x7c] sm:$0xf]
          %v2262 = vunpack.c.l.b16 %v2198
          %v2263 = vunpack.c.l.b16 %v2199
          %v2264 = vunpack.c.l.b16 %v2200
          %v2265 = vunpack.c.l.b16 %v2201
          %v2266 = vunpack.c.l.b16 %v2202
          %v2267 = vunpack.c.l.b16 %v2203
          %v2268 = vunpack.c.l.b16 %v2204
          %v2269 = vunpack.c.l.b16 %v2205
          %v2270 = vunpack.c.l.b16 %v2206
          %v2271 = vunpack.c.l.b16 %v2207
          %v2272 = vunpack.c.l.b16 %v2208
          %v2273 = vunpack.c.l.b16 %v2209
          %v2274 = vunpack.c.l.b16 %v2210
          %v2275 = vunpack.c.l.b16 %v2211
          %v2276 = vunpack.c.l.b16 %v2212
          %v2277 = vunpack.c.l.b16 %v2213
          %v2278 = vunpack.c.l.b16 %v2214
          %v2279 = vunpack.c.l.b16 %v2215
          %v2280 = vunpack.c.l.b16 %v2216
          %v2281 = vunpack.c.l.b16 %v2217
          %v2282 = vunpack.c.l.b16 %v2218
          %v2283 = vunpack.c.l.b16 %v2219
          %v2284 = vunpack.c.l.b16 %v2220
          %v2285 = vunpack.c.l.b16 %v2221
          %v2286 = vunpack.c.l.b16 %v2222
          %v2287 = vunpack.c.l.b16 %v2223
          %v2288 = vunpack.c.l.b16 %v2224
          %v2289 = vunpack.c.l.b16 %v2225
          %v2290 = vunpack.c.l.b16 %v2226
          %v2291 = vunpack.c.l.b16 %v2227
          %v2292 = vunpack.c.l.b16 %v2228
          %v2293 = vunpack.c.l.b16 %v2229
          %v2294 = vpack.c.b16 %v2263, %v2262
          %v2295 = vpack.c.b16 %v2265, %v2264
          %v2296 = vpack.c.b16 %v2267, %v2266
          %v2297 = vpack.c.b16 %v2269, %v2268
          %v2298 = vpack.c.b16 %v2271, %v2270
          %v2299 = vpack.c.b16 %v2273, %v2272
          %v2300 = vpack.c.b16 %v2275, %v2274
          %v2301 = vpack.c.b16 %v2277, %v2276
          %v2302 = vpack.c.b16 %v2279, %v2278
          %v2303 = vpack.c.b16 %v2281, %v2280
          %v2304 = vpack.c.b16 %v2283, %v2282
          %v2305 = vpack.c.b16 %v2285, %v2284
          %v2306 = vpack.c.b16 %v2287, %v2286
          %v2307 = vpack.c.b16 %v2289, %v2288
          %v2308 = vpack.c.b16 %v2291, %v2290
          %v2309 = vpack.c.b16 %v2293, %v2292
          %2326 = vmatpush.bf16.msra.mxu0 %v2301
          %2327 = vmatpush.bf16.msra.mxu0 %v2300
          %2328 = vmatpush.bf16.msra.mxu0 %v2299
          %2329 = vmatpush.bf16.msra.mxu0 %v2298
          %2330 = vmatpush.bf16.msra.mxu0 %v2297
          %2331 = vmatpush.bf16.msra.mxu0 %v2296
          %2332 = vmatpush.bf16.msra.mxu0 %v2295
          %2333 = vmatpush.bf16.msra.mxu0 %v2294
          %2334 = vmatmul.bf16.gmra.mxu0 %v2181
          %v2335 = vpop.f32.mrf.mxu0
          %v2336 = vadd.f32 0.0, %v2335
          %v2337 = vpop.f32.mrf.mxu0
          %v2338 = vadd.f32 0.0, %v2337
          %2339 = vmatmul.bf16.gmra.mxu0 %v2183
          %v2340 = vpop.f32.mrf.mxu0
          %v2341 = vadd.f32 0.0, %v2340
          %v2342 = vpop.f32.mrf.mxu0
          %v2343 = vadd.f32 0.0, %v2342
          %2344 = vmatmul.bf16.gmra.mxu0 %v2185
          %v2345 = vpop.f32.mrf.mxu0
          %v2346 = vadd.f32 0.0, %v2345
          %v2347 = vpop.f32.mrf.mxu0
          %v2348 = vadd.f32 0.0, %v2347
          %2349 = vmatmul.bf16.gmra.mxu0 %v2187
          %v2350 = vpop.f32.mrf.mxu0
          %v2351 = vadd.f32 0.0, %v2350
          %v2352 = vpop.f32.mrf.mxu0
          %v2353 = vadd.f32 0.0, %v2352
          %2354 = vmatmul.bf16.gmra.mxu0 %v2189
          %v2355 = vpop.f32.mrf.mxu0
          %v2356 = vadd.f32 0.0, %v2355
          %v2357 = vpop.f32.mrf.mxu0
          %v2358 = vadd.f32 0.0, %v2357
          %2359 = vmatmul.bf16.gmra.mxu0 %v2191
          %v2360 = vpop.f32.mrf.mxu0
          %v2361 = vadd.f32 0.0, %v2360
          %v2362 = vpop.f32.mrf.mxu0
          %v2363 = vadd.f32 0.0, %v2362
          %2364 = vmatmul.bf16.gmra.mxu0 %v2193
          %v2365 = vpop.f32.mrf.mxu0
          %v2366 = vadd.f32 0.0, %v2365
          %v2367 = vpop.f32.mrf.mxu0
          %v2368 = vadd.f32 0.0, %v2367
          %2369 = vmatmul.bf16.gmra.mxu0 %v2195
          %v2370 = vpop.f32.mrf.mxu0
          %v2371 = vadd.f32 0.0, %v2370
          %v2372 = vpop.f32.mrf.mxu0
          %v2373 = vadd.f32 0.0, %v2372
          %2374 = vdwg.mxu0
          %2375 = vmatpush.bf16.msra.mxu0 %v2309
          %2376 = vmatpush.bf16.msra.mxu0 %v2308
          %2377 = vmatpush.bf16.msra.mxu0 %v2307
          %2378 = vmatpush.bf16.msra.mxu0 %v2306
          %2379 = vmatpush.bf16.msra.mxu0 %v2305
          %2380 = vmatpush.bf16.msra.mxu0 %v2304
          %2381 = vmatpush.bf16.msra.mxu0 %v2303
          %2382 = vmatpush.bf16.msra.mxu0 %v2302
          %2383 = vmatmul.bf16.gmra.mxu0 %v2182
          %v2384 = vpop.f32.mrf.mxu0
          %v2385 = vadd.f32 %v2336, %v2384
          %v2386 = vpop.f32.mrf.mxu0
          %v2387 = vadd.f32 %v2338, %v2386
          %2388 = vmatmul.bf16.gmra.mxu0 %v2184
          %v2389 = vpop.f32.mrf.mxu0
          %v2390 = vadd.f32 %v2341, %v2389
          %v2391 = vpop.f32.mrf.mxu0
          %v2392 = vadd.f32 %v2343, %v2391
          %2393 = vmatmul.bf16.gmra.mxu0 %v2186
          %v2394 = vpop.f32.mrf.mxu0
          %v2395 = vadd.f32 %v2346, %v2394
          %v2396 = vpop.f32.mrf.mxu0
          %v2397 = vadd.f32 %v2348, %v2396
          %2398 = vmatmul.bf16.gmra.mxu0 %v2188
          %v2399 = vpop.f32.mrf.mxu0
          %v2400 = vadd.f32 %v2351, %v2399
          %v2401 = vpop.f32.mrf.mxu0
          %v2402 = vadd.f32 %v2353, %v2401
          %2403 = vmatmul.bf16.gmra.mxu0 %v2190
          %v2404 = vpop.f32.mrf.mxu0
          %v2405 = vadd.f32 %v2356, %v2404
          %v2406 = vpop.f32.mrf.mxu0
          %v2407 = vadd.f32 %v2358, %v2406
          %2408 = vmatmul.bf16.gmra.mxu0 %v2192
          %v2409 = vpop.f32.mrf.mxu0
          %v2410 = vadd.f32 %v2361, %v2409
          %v2411 = vpop.f32.mrf.mxu0
          %v2412 = vadd.f32 %v2363, %v2411
          %2413 = vmatmul.bf16.gmra.mxu0 %v2194
          %v2414 = vpop.f32.mrf.mxu0
          %v2415 = vadd.f32 %v2366, %v2414
          %v2416 = vpop.f32.mrf.mxu0
          %v2417 = vadd.f32 %v2368, %v2416
          %2418 = vmatmul.bf16.gmra.mxu0 %v2196
          %v2419 = vpop.f32.mrf.mxu0
          %v2420 = vadd.f32 %v2371, %v2419
          %v2421 = vpop.f32.mrf.mxu0
          %v2422 = vadd.f32 %v2373, %v2421
          %2423 = vdwg.mxu0
          %v2424 = vperm.slane %v1099, 2
          %v2425 = vmul.f32 %v2385, %v2424
          %v2426 = vmul.f32 %v2387, %v2424
          %v2427 = vmul.f32 %v2390, %v2424
          %v2428 = vmul.f32 %v2392, %v2424
          %v2429 = vmul.f32 %v2395, %v2424
          %v2430 = vmul.f32 %v2397, %v2424
          %v2431 = vmul.f32 %v2400, %v2424
          %v2432 = vmul.f32 %v2402, %v2424
          %v2433 = vmul.f32 %v2405, %v2424
          %v2434 = vmul.f32 %v2407, %v2424
          %v2435 = vmul.f32 %v2410, %v2424
          %v2436 = vmul.f32 %v2412, %v2424
          %v2437 = vmul.f32 %v2415, %v2424
          %v2438 = vmul.f32 %v2417, %v2424
          %v2439 = vmul.f32 %v2420, %v2424
          %v2440 = vmul.f32 %v2422, %v2424
          %v2441 = vperm.slane %v1099, 3
          %v2442 = vadd.f32 %v2425, %v2441
          %v2443 = vadd.f32 %v2426, %v2441
          %v2444 = vadd.f32 %v2427, %v2441
          %v2445 = vadd.f32 %v2428, %v2441
          %v2446 = vadd.f32 %v2429, %v2441
          %v2447 = vadd.f32 %v2430, %v2441
          %v2448 = vadd.f32 %v2431, %v2441
          %v2449 = vadd.f32 %v2432, %v2441
          %v2450 = vadd.f32 %v2433, %v2441
          %v2451 = vadd.f32 %v2434, %v2441
          %v2452 = vadd.f32 %v2435, %v2441
          %v2453 = vadd.f32 %v2436, %v2441
          %v2454 = vadd.f32 %v2437, %v2441
          %v2455 = vadd.f32 %v2438, %v2441
          %v2456 = vadd.f32 %v2439, %v2441
          %v2457 = vadd.f32 %v2440, %v2441
          %v2458 = vmax.f32 %v2442, 0.0
          %v2459 = vmax.f32 %v2443, 0.0
          %v2460 = vmax.f32 %v2444, 0.0
          %v2461 = vmax.f32 %v2445, 0.0
          %v2462 = vmax.f32 %v2446, 0.0
          %v2463 = vmax.f32 %v2447, 0.0
          %v2464 = vmax.f32 %v2448, 0.0
          %v2465 = vmax.f32 %v2449, 0.0
          %v2466 = vmax.f32 %v2450, 0.0
          %v2467 = vmax.f32 %v2451, 0.0
          %v2468 = vmax.f32 %v2452, 0.0
          %v2469 = vmax.f32 %v2453, 0.0
          %v2470 = vmax.f32 %v2454, 0.0
          %v2471 = vmax.f32 %v2455, 0.0
          %v2472 = vmax.f32 %v2456, 0.0
          %v2473 = vmax.f32 %v2457, 0.0
          %2474 = vst [vmem:[#allocation3] sm:$0xff] %v2458
          %2475 = vst [vmem:[#allocation3 + $0x8] sm:$0xff] %v2459
          %2476 = vst [vmem:[#allocation3 + $0x10] sm:$0xff] %v2460
          %2477 = vst [vmem:[#allocation3 + $0x18] sm:$0xff] %v2461
          %2478 = vst [vmem:[#allocation3 + $0x20] sm:$0xff] %v2462
          %2479 = vst [vmem:[#allocation3 + $0x28] sm:$0xff] %v2463
          %2480 = vst [vmem:[#allocation3 + $0x30] sm:$0xff] %v2464
          %2481 = vst [vmem:[#allocation3 + $0x38] sm:$0xff] %v2465
          %2482 = vst [vmem:[#allocation3 + $0x40] sm:$0xff] %v2466
          %2483 = vst [vmem:[#allocation3 + $0x48] sm:$0xff] %v2467
          %2484 = vst [vmem:[#allocation3 + $0x50] sm:$0xff] %v2468
          %2485 = vst [vmem:[#allocation3 + $0x58] sm:$0xff] %v2469
          %2486 = vst [vmem:[#allocation3 + $0x60] sm:$0xff] %v2470
          %2487 = vst [vmem:[#allocation3 + $0x68] sm:$0xff] %v2471
          %2488 = vst [vmem:[#allocation3 + $0x70] sm:$0xff] %v2472
          %2489 = vst [vmem:[#allocation3 + $0x78] sm:$0xff] %v2473
        $region80: #{gnn_graph_forward.1} parent=67 // pred_fallthru
          _
        %p2490 = scmp.eq.s32.totalorder %s24, 2
        // Predicated region
        $region81: #{gnn_graph_forward.1} parent=67 // pred_check
          %p2491 = pneg %p2490
        $region82: #{gnn_graph_forward.1} parent=67 // pred_check_branch
          %2493 = sbr.rel (%p2491) target = $region84
        $region83: #{gnn_graph_forward.1} parent=67 // pred_region
          %v2494 = vld [vmem:[%s5] sm:$0xf]
          %v2495 = vld [vmem:[%s5 + $0x4] sm:$0xf]
          %v2496 = vld [vmem:[%s5 + $0x8] sm:$0xf]
          %v2497 = vld [vmem:[%s5 + $0xc] sm:$0xf]
          %v2498 = vld [vmem:[%s5 + $0x10] sm:$0xf]
          %v2499 = vld [vmem:[%s5 + $0x14] sm:$0xf]
          %v2500 = vld [vmem:[%s5 + $0x18] sm:$0xf]
          %v2501 = vld [vmem:[%s5 + $0x1c] sm:$0xf]
          %v2502 = vld [vmem:[%s5 + $0x20] sm:$0xf]
          %v2503 = vld [vmem:[%s5 + $0x24] sm:$0xf]
          %v2504 = vld [vmem:[%s5 + $0x28] sm:$0xf]
          %v2505 = vld [vmem:[%s5 + $0x2c] sm:$0xf]
          %v2506 = vld [vmem:[%s5 + $0x30] sm:$0xf]
          %v2507 = vld [vmem:[%s5 + $0x34] sm:$0xf]
          %v2508 = vld [vmem:[%s5 + $0x38] sm:$0xf]
          %v2509 = vld [vmem:[%s5 + $0x3c] sm:$0xf]
          %v2510 = vpack.c.bf16 %v1698, %v1697
          %v2511 = vpack.c.bf16 %v1700, %v1699
          %v2512 = vpack.c.bf16 %v1702, %v1701
          %v2513 = vpack.c.bf16 %v1704, %v1703
          %v2514 = vpack.c.bf16 %v1706, %v1705
          %v2515 = vpack.c.bf16 %v1708, %v1707
          %v2516 = vpack.c.bf16 %v1710, %v1709
          %v2517 = vpack.c.bf16 %v1712, %v1711
          %v2534 = vunpack.c.l.b16 %v2494
          %v2535 = vunpack.c.l.b16 %v2495
          %v2536 = vunpack.c.l.b16 %v2496
          %v2537 = vunpack.c.l.b16 %v2497
          %v2538 = vunpack.c.l.b16 %v2498
          %v2539 = vunpack.c.l.b16 %v2499
          %v2540 = vunpack.c.l.b16 %v2500
          %v2541 = vunpack.c.l.b16 %v2501
          %v2542 = vunpack.c.l.b16 %v2502
          %v2543 = vunpack.c.l.b16 %v2503
          %v2544 = vunpack.c.l.b16 %v2504
          %v2545 = vunpack.c.l.b16 %v2505
          %v2546 = vunpack.c.l.b16 %v2506
          %v2547 = vunpack.c.l.b16 %v2507
          %v2548 = vunpack.c.l.b16 %v2508
          %v2549 = vunpack.c.l.b16 %v2509
          %v2550 = vpack.c.b16 %v2535, %v2534
          %v2551 = vpack.c.b16 %v2537, %v2536
          %v2552 = vpack.c.b16 %v2539, %v2538
          %v2553 = vpack.c.b16 %v2541, %v2540
          %v2554 = vpack.c.b16 %v2543, %v2542
          %v2555 = vpack.c.b16 %v2545, %v2544
          %v2556 = vpack.c.b16 %v2547, %v2546
          %v2557 = vpack.c.b16 %v2549, %v2548
          %2566 = vmatpush.bf16.msra.mxu0 %v2517
          %2567 = vmatpush.bf16.msra.mxu0 %v2516
          %2568 = vmatpush.bf16.msra.mxu0 %v2515
          %2569 = vmatpush.bf16.msra.mxu0 %v2514
          %2570 = vmatpush.bf16.msra.mxu0 %v2513
          %2571 = vmatpush.bf16.msra.mxu0 %v2512
          %2572 = vmatpush.bf16.msra.mxu0 %v2511
          %2573 = vmatpush.bf16.msra.mxu0 %v2510
          %2574 = vmatmul.bf16.gmra.mxu0 %v2550
          %v2575 = vpop.f32.mrf.mxu0
          %v2576 = vadd.f32 0.0, %v2575
          %v2577 = vpop.f32.mrf.mxu0
          %v2578 = vadd.f32 0.0, %v2577
          %2579 = vmatmul.bf16.gmra.mxu0 %v2551
          %v2580 = vpop.f32.mrf.mxu0
          %v2581 = vadd.f32 0.0, %v2580
          %v2582 = vpop.f32.mrf.mxu0
          %v2583 = vadd.f32 0.0, %v2582
          %2584 = vmatmul.bf16.gmra.mxu0 %v2552
          %v2585 = vpop.f32.mrf.mxu0
          %v2586 = vadd.f32 0.0, %v2585
          %v2587 = vpop.f32.mrf.mxu0
          %v2588 = vadd.f32 0.0, %v2587
          %2589 = vmatmul.bf16.gmra.mxu0 %v2553
          %v2590 = vpop.f32.mrf.mxu0
          %v2591 = vadd.f32 0.0, %v2590
          %v2592 = vpop.f32.mrf.mxu0
          %v2593 = vadd.f32 0.0, %v2592
          %2594 = vmatmul.bf16.gmra.mxu0 %v2554
          %v2595 = vpop.f32.mrf.mxu0
          %v2596 = vadd.f32 0.0, %v2595
          %v2597 = vpop.f32.mrf.mxu0
          %v2598 = vadd.f32 0.0, %v2597
          %2599 = vmatmul.bf16.gmra.mxu0 %v2555
          %v2600 = vpop.f32.mrf.mxu0
          %v2601 = vadd.f32 0.0, %v2600
          %v2602 = vpop.f32.mrf.mxu0
          %v2603 = vadd.f32 0.0, %v2602
          %2604 = vmatmul.bf16.gmra.mxu0 %v2556
          %v2605 = vpop.f32.mrf.mxu0
          %v2606 = vadd.f32 0.0, %v2605
          %v2607 = vpop.f32.mrf.mxu0
          %v2608 = vadd.f32 0.0, %v2607
          %2609 = vmatmul.bf16.gmra.mxu0 %v2557
          %v2610 = vpop.f32.mrf.mxu0
          %v2611 = vadd.f32 0.0, %v2610
          %v2612 = vpop.f32.mrf.mxu0
          %v2613 = vadd.f32 0.0, %v2612
          %2614 = vdwg.mxu0
          %2615 = vst [vmem:[%s12] sm:$0xff] %v2576
          %2616 = vst [vmem:[%s12 + $0x8] sm:$0xff] %v2578
          %2617 = vst [vmem:[%s12 + $0x10] sm:$0xff] %v2581
          %2618 = vst [vmem:[%s12 + $0x18] sm:$0xff] %v2583
          %2619 = vst [vmem:[%s12 + $0x20] sm:$0xff] %v2586
          %2620 = vst [vmem:[%s12 + $0x28] sm:$0xff] %v2588
          %2621 = vst [vmem:[%s12 + $0x30] sm:$0xff] %v2591
          %2622 = vst [vmem:[%s12 + $0x38] sm:$0xff] %v2593
          %2623 = vst [vmem:[%s12 + $0x40] sm:$0xff] %v2596
          %2624 = vst [vmem:[%s12 + $0x48] sm:$0xff] %v2598
          %2625 = vst [vmem:[%s12 + $0x50] sm:$0xff] %v2601
          %2626 = vst [vmem:[%s12 + $0x58] sm:$0xff] %v2603
          %2627 = vst [vmem:[%s12 + $0x60] sm:$0xff] %v2606
          %2628 = vst [vmem:[%s12 + $0x68] sm:$0xff] %v2608
          %2629 = vst [vmem:[%s12 + $0x70] sm:$0xff] %v2611
          %2630 = vst [vmem:[%s12 + $0x78] sm:$0xff] %v2613
        $region84: #{gnn_graph_forward.1} parent=67 // pred_fallthru
          _
        // Predicated region
        $region85: #{gnn_graph_forward.1} parent=67 // pred_check
          %p2631 = pneg %p314
        $region86: #{gnn_graph_forward.1} parent=67 // pred_check_branch
          %2633 = sbr.rel (%p2631) target = $region88
        $region87: #{gnn_graph_forward.1} parent=67 // pred_region
          _
        $region88: #{gnn_graph_forward.1} parent=67 // pred_fallthru
          _
        // Predicated region
        $region89: #{gnn_graph_forward.1} parent=67 // pred_check
          %p2634 = pneg %p314
        $region90: #{gnn_graph_forward.1} parent=67 // pred_check_branch
          %2636 = sbr.rel (%p2634) target = $region92
        $region91: #{gnn_graph_forward.1} parent=67 // pred_region
          _
        $region92: #{gnn_graph_forward.1} parent=67 // pred_fallthru
          _
      $region68: #{gnn_graph_forward.1} parent=5 // pred_fallthru
        _
      %p2637 = scmp.le.s32.totalorder 2, %s19
      // Predicated region
      $region93: #{gnn_graph_forward.1} parent=5 // pred_check
        %p2638 = pneg %p2637
      $region94: #{gnn_graph_forward.1} parent=5 // pred_check_branch
        %2640 = sbr.rel (%p2638) target = $region96
      $region95: #{gnn_graph_forward.1} parent=5 // pred_region
        %s2641 = ssub.s32 %s19, 2
      $region96: #{gnn_graph_forward.1} parent=5 // pred_fallthru
        _
    $region6: #{gnn_graph_forward.1} parent=1 // loop_footer
      %s23 = sadd.s32 1, %s19
    $region7: #{gnn_graph_forward.1} parent=1 // loop_footer_branch
      %18 = sbr.rel target = $region3
    $region8: #{gnn_graph_forward.1} parent=1 // loop_exit
      _
    %2642 = vsyncpa [#allocation5], 1
    %s2643 = scalar_lea.sflag [#allocation5], 1
    %2644 = vsyncpa %s2643, 1

</llo_original>
